<compile_context>
chip_gen: v7x
topology: tpu7x:2x2x1
jax: 0.10.0
libtpu: 0.0.40
codegen_flags: <defaults>
</compile_context>

<pallas_src>
import jax
import jax.numpy as jnp
from jax.experimental import pallas as pl
from jax.experimental.pallas import tpu as pltpu

# ----------------------------- configuration -------------------------------
INPUT_SIZE = 4        # txyz coordinate dimension
LATENT_SIZE = 28      # latent embedding dimension
LATENT_COUNT = 8
HIDDEN = 64
OUTPUT = 16
D_IN = INPUT_SIZE + LATENT_SIZE   # 32 (used only for weight init / reference)

TM_MAX = 1024         # max rows per grid step (sweepable, multiple of 8)


def _round_up(n, m):
    return ((n + m - 1) // m) * m


# ------------------------------ Pallas kernel -------------------------------
def mlp_kernel(x_ref, bias0_ref,
               w0_ref, w1_ref, b1_ref, w2_ref, b2_ref, w3_ref, b3_ref,
               o_ref):
    """4-layer MLP, ReLU activations, 'fullresidual' skips on the H->H layers.

    Layer 0 uses only the INPUT_SIZE coordinate columns of W0; the latent
    embedding columns + bias were pre-folded into the per-batch `bias0` row.
    All math runs in f32 regardless of the streamed I/O dtype.
    """
    x = x_ref[0].astype(jnp.float32)                                 # (TM, 4)

    # layer 0: (4 -> H) with folded latent bias; in != out, so no residual
    h = jnp.dot(x, w0_ref[...], preferred_element_type=jnp.float32) + bias0_ref[0]
    h = jnp.maximum(h, 0.0)

    # layer 1: (H -> H), fullresidual
    h1 = jnp.dot(h, w1_ref[...], preferred_element_type=jnp.float32) + b1_ref[...]
    h1 = jnp.maximum(h1, 0.0)
    h1 = (h1 + h) * 0.5

    # layer 2: (H -> H), fullresidual
    h2 = jnp.dot(h1, w2_ref[...], preferred_element_type=jnp.float32) + b2_ref[...]
    h2 = jnp.maximum(h2, 0.0)
    h2 = (h2 + h1) * 0.5

    # layer 3: (H -> O); the Relu activation module still activates its output
    out = jnp.dot(h2, w3_ref[...], preferred_element_type=jnp.float32) + b3_ref[...]
    out = jnp.maximum(out, 0.0)

    o_ref[0] = out.astype(o_ref.dtype)


# ------------------------------ wrapper -------------------------------------
def network_forward(txyz, latent_idx, params, io_dtype=jnp.float32, tm_max=TM_MAX):
    """Reproduces Network.forward for the chosen config.

    txyz:       (B, P, INPUT_SIZE) float32
    latent_idx: (B,) int32
    io_dtype:   dtype of the streamed input/output (bf16 recommended v6e/v7x)
    """
    B, P, _ = txyz.shape
    emb, (w0, b0), (w1, b1), (w2, b2), (w3, b3) = params

    # position encoding: 'none' -> identity (txyz passes straight through)

    # Fold the latent-embedding columns of W0 and b0 into a per-batch bias.
    h = jnp.take(emb, latent_idx, axis=0)                       # (B, LATENT_SIZE)
    bias0 = (h @ w0[INPUT_SIZE:] + b0)[:, None, :]              # (B, 1, H) f32
    w0a = w0[:INPUT_SIZE]                                       # (4, H)

    # row tiling: up to tm_max rows per grid step, pad P if needed
    tm = max(8, min(tm_max, _round_up(P, 8)))
    p_pad = _round_up(P, tm)
    x = txyz.astype(io_dtype)
    if p_pad != P:
        x = jnp.pad(x, ((0, 0), (0, p_pad - P), (0, 0)))

    b1r = b1.reshape(1, -1)
    b2r = b2.reshape(1, -1)
    b3r = b3.reshape(1, -1)

    grid = (B, p_pad // tm)

    # advisory cost estimate for XLA's scheduler
    itemsize = jnp.dtype(io_dtype).itemsize
    flops = 2 * B * p_pad * (INPUT_SIZE * HIDDEN + 2 * HIDDEN * HIDDEN
                             + HIDDEN * OUTPUT)
    bytes_accessed = (B * p_pad * INPUT_SIZE * itemsize
                      + B * p_pad * OUTPUT * itemsize
                      + sum(int(a.size) * a.dtype.itemsize
                            for a in (bias0, w0a, w1, b1r, w2, b2r, w3, b3r)))
    cost = pl.CostEstimate(flops=int(flops), transcendentals=0,
                           bytes_accessed=int(bytes_accessed))

    full2d = lambda shape: pl.BlockSpec(shape, lambda b, j: (0, 0))

    out = pl.pallas_call(
        mlp_kernel,
        out_shape=jax.ShapeDtypeStruct((B, p_pad, OUTPUT), io_dtype),
        grid=grid,
        in_specs=[
            pl.BlockSpec((1, tm, INPUT_SIZE), lambda b, j: (b, j, 0)),   # txyz
            pl.BlockSpec((1, 1, HIDDEN), lambda b, j: (b, 0, 0)),        # bias0
            full2d((INPUT_SIZE, HIDDEN)),                                # w0a
            full2d((HIDDEN, HIDDEN)), full2d((1, HIDDEN)),               # w1, b1
            full2d((HIDDEN, HIDDEN)), full2d((1, HIDDEN)),               # w2, b2
            full2d((HIDDEN, OUTPUT)), full2d((1, OUTPUT)),               # w3, b3
        ],
        out_specs=pl.BlockSpec((1, tm, OUTPUT), lambda b, j: (b, j, 0)),
        compiler_params=pltpu.CompilerParams(
            dimension_semantics=("parallel", "parallel")),
        cost_estimate=cost,
    )(x, bias0, w0a, w1, b1r, w2, b2r, w3, b3r)

    if p_pad != P:
        out = out[:, :P]
    return out


# ----------------------- deterministic parameter init -----------------------
def init_params(key):
    k0, k1, k2, k3, kb0, kb1, kb2, kb3 = jax.random.split(key, 8)

    def linear(kw, kb, fan_in, fan_out):
        bound = 1.0 / jnp.sqrt(fan_in)
        w = jax.random.uniform(kw, (fan_in, fan_out), jnp.float32, -bound, bound)
        b = jax.random.uniform(kb, (fan_out,), jnp.float32, -bound, bound)
        return w, b

    # Embedding weight *= 0 in __init__ -> all zeros
    emb = jnp.zeros((LATENT_COUNT, LATENT_SIZE), jnp.float32)

    l0 = linear(k0, kb0, D_IN, HIDDEN)
    l1 = linear(k1, kb1, HIDDEN, HIDDEN)
    l2 = linear(k2, kb2, HIDDEN, HIDDEN)
    l3 = linear(k3, kb3, HIDDEN, OUTPUT)
    return emb, l0, l1, l2, l3


# ---------------------------- pure-JAX reference ----------------------------
def reference_forward(txyz, latent_idx, params):
    emb, (w0, b0), (w1, b1), (w2, b2), (w3, b3) = params
    B, P, _ = txyz.shape
    h = jnp.take(emb, latent_idx, axis=0)
    x = jnp.concatenate(
        [txyz, jnp.broadcast_to(h[:, None, :], (B, P, LATENT_SIZE))], axis=-1)
    a = jnp.maximum(x @ w0 + b0, 0.0)
    b = jnp.maximum(a @ w1 + b1, 0.0); b = (b + a) * 0.5
    c = jnp.maximum(b @ w2 + b2, 0.0); c = (c + b) * 0.5
    return jnp.maximum(c @ w3 + b3, 0.0)


if __name__ == "__main__":
    key = jax.random.PRNGKey(0)
    kp, kx, ki = jax.random.split(key, 3)

    params = init_params(kp)

    B, P = 2, 256
    txyz = jax.random.normal(kx, (B, P, INPUT_SIZE), jnp.float32)
    latent_idx = jax.random.randint(ki, (B,), 0, LATENT_COUNT, jnp.int32)

    ref = reference_forward(txyz, latent_idx, params)

    # f32 streamed-I/O path (exact match with the reference)
    out = jax.block_until_ready(network_forward(txyz, latent_idx, params))
    assert out.shape == (B, P, OUTPUT)
    assert jnp.allclose(out, ref, atol=1e-5, rtol=1e-5), "f32 mismatch vs reference"

    # bf16 streamed-I/O path (recommended on v6e/v7x); math stays f32 in-kernel
    out_bf = jax.block_until_ready(
        network_forward(txyz, latent_idx, params, io_dtype=jnp.bfloat16))
    assert out_bf.shape == (B, P, OUTPUT)
    assert jnp.allclose(out_bf.astype(jnp.float32), ref, atol=5e-2, rtol=5e-2), \
        "bf16 mismatch vs reference"

    # non-divisible P exercises the padded-tail path
    P2 = 100
    txyz2 = jax.random.normal(kx, (B, P2, INPUT_SIZE), jnp.float32)
    out2 = jax.block_until_ready(network_forward(txyz2, latent_idx, params))
    ref2 = reference_forward(txyz2, latent_idx, params)
    assert out2.shape == (B, P2, OUTPUT)
    assert jnp.allclose(out2, ref2, atol=1e-5, rtol=1e-5), "padded-P mismatch"

    print("KERNEL_OK")
</pallas_src>

<mosaic_0001>
module attributes {stable_mosaic.version = 11 : i64} {
  func.func @mlp_kernel(%arg0: i32, %arg1: i32, %arg2: memref<1x256x4xf32, #tpu.memory_space<vmem>>, %arg3: memref<1x1x64xf32, #tpu.memory_space<vmem>>, %arg4: memref<4x64xf32, #tpu.memory_space<vmem>>, %arg5: memref<64x64xf32, #tpu.memory_space<vmem>>, %arg6: memref<1x64xf32, #tpu.memory_space<vmem>>, %arg7: memref<64x64xf32, #tpu.memory_space<vmem>>, %arg8: memref<1x64xf32, #tpu.memory_space<vmem>>, %arg9: memref<64x16xf32, #tpu.memory_space<vmem>>, %arg10: memref<1x16xf32, #tpu.memory_space<vmem>>, %arg11: memref<1x256x16xf32, #tpu.memory_space<vmem>>) attributes {dimension_semantics = [#tpu.dimension_semantics<parallel>, #tpu.dimension_semantics<parallel>], iteration_bounds = array<i64: 2, 1>, scalar_prefetch = 0 : i64, scratch_operands = 0 : i64, tpu.core_type = #tpu.core_type<tc>, window_params = [{transform_indices = @transform_0, window_bounds = array<i64: 1, 256, 4>}, {transform_indices = @transform_1, window_bounds = array<i64: 1, 1, 64>}, {pipeline_mode = #tpu.pipeline_mode<synchronous>, transform_indices = @transform_2, window_bounds = array<i64: 4, 64>}, {pipeline_mode = #tpu.pipeline_mode<synchronous>, transform_indices = @transform_3, window_bounds = array<i64: 64, 64>}, {pipeline_mode = #tpu.pipeline_mode<synchronous>, transform_indices = @transform_4, window_bounds = array<i64: 1, 64>}, {pipeline_mode = #tpu.pipeline_mode<synchronous>, transform_indices = @transform_5, window_bounds = array<i64: 64, 64>}, {pipeline_mode = #tpu.pipeline_mode<synchronous>, transform_indices = @transform_6, window_bounds = array<i64: 1, 64>}, {pipeline_mode = #tpu.pipeline_mode<synchronous>, transform_indices = @transform_7, window_bounds = array<i64: 64, 16>}, {pipeline_mode = #tpu.pipeline_mode<synchronous>, transform_indices = @transform_8, window_bounds = array<i64: 1, 16>}, {transform_indices = @transform_9, window_bounds = array<i64: 1, 256, 16>}]} {
    %c0 = arith.constant 0 : index
    %c0_0 = arith.constant 0 : index
    %c0_1 = arith.constant 0 : index
    %0 = vector.load %arg2[%c0, %c0_0, %c0_1] : memref<1x256x4xf32, #tpu.memory_space<vmem>>, vector<1x256x4xf32>
    %1 = vector.shape_cast %0 : vector<1x256x4xf32> to vector<256x4xf32>
    %c0_2 = arith.constant 0 : index
    %c0_3 = arith.constant 0 : index
    %2 = vector.load %arg4[%c0_2, %c0_3] : memref<4x64xf32, #tpu.memory_space<vmem>>, vector<4x64xf32>
    %cst = arith.constant dense<0.000000e+00> : vector<256x64xf32>
    %3 = tpu.matmul %1, %2, %cst {dimension_numbers = #tpu.dot_dimension_numbers<[1], [0], [0], [1], [0, 0, 1, 1], [], []>} : vector<256x4xf32>, vector<4x64xf32>, vector<256x64xf32> -> vector<256x64xf32>
    %c0_4 = arith.constant 0 : index
    %c0_5 = arith.constant 0 : index
    %c0_6 = arith.constant 0 : index
    %4 = vector.load %arg3[%c0_4, %c0_5, %c0_6] : memref<1x1x64xf32, #tpu.memory_space<vmem>>, vector<1x1x64xf32>
    %5 = vector.shape_cast %4 : vector<1x1x64xf32> to vector<1x64xf32>
    %6 = vector.broadcast %5 : vector<1x64xf32> to vector<256x64xf32>
    %7 = arith.addf %3, %6 : vector<256x64xf32>
    %cst_7 = arith.constant 0.000000e+00 : f32
    %8 = vector.broadcast %cst_7 : f32 to vector<256x64xf32>
    %9 = arith.maximumf %7, %8 : vector<256x64xf32>
    %c0_8 = arith.constant 0 : index
    %c0_9 = arith.constant 0 : index
    %10 = vector.load %arg5[%c0_8, %c0_9] : memref<64x64xf32, #tpu.memory_space<vmem>>, vector<64x64xf32>
    %cst_10 = arith.constant dense<0.000000e+00> : vector<256x64xf32>
    %11 = tpu.matmul %9, %10, %cst_10 {dimension_numbers = #tpu.dot_dimension_numbers<[1], [0], [0], [1], [0, 0, 1, 1], [], []>} : vector<256x64xf32>, vector<64x64xf32>, vector<256x64xf32> -> vector<256x64xf32>
    %c0_11 = arith.constant 0 : index
    %c0_12 = arith.constant 0 : index
    %12 = vector.load %arg6[%c0_11, %c0_12] : memref<1x64xf32, #tpu.memory_space<vmem>>, vector<1x64xf32>
    %13 = vector.broadcast %12 : vector<1x64xf32> to vector<256x64xf32>
    %14 = arith.addf %11, %13 : vector<256x64xf32>
    %cst_13 = arith.constant 0.000000e+00 : f32
    %15 = vector.broadcast %cst_13 : f32 to vector<256x64xf32>
    %16 = arith.maximumf %14, %15 : vector<256x64xf32>
    %17 = arith.addf %16, %9 : vector<256x64xf32>
    %cst_14 = arith.constant 5.000000e-01 : f32
    %18 = vector.broadcast %cst_14 : f32 to vector<256x64xf32>
    %19 = arith.mulf %17, %18 : vector<256x64xf32>
    %c0_15 = arith.constant 0 : index
    %c0_16 = arith.constant 0 : index
    %20 = vector.load %arg7[%c0_15, %c0_16] : memref<64x64xf32, #tpu.memory_space<vmem>>, vector<64x64xf32>
    %cst_17 = arith.constant dense<0.000000e+00> : vector<256x64xf32>
    %21 = tpu.matmul %19, %20, %cst_17 {dimension_numbers = #tpu.dot_dimension_numbers<[1], [0], [0], [1], [0, 0, 1, 1], [], []>} : vector<256x64xf32>, vector<64x64xf32>, vector<256x64xf32> -> vector<256x64xf32>
    %c0_18 = arith.constant 0 : index
    %c0_19 = arith.constant 0 : index
    %22 = vector.load %arg8[%c0_18, %c0_19] : memref<1x64xf32, #tpu.memory_space<vmem>>, vector<1x64xf32>
    %23 = vector.broadcast %22 : vector<1x64xf32> to vector<256x64xf32>
    %24 = arith.addf %21, %23 : vector<256x64xf32>
    %cst_20 = arith.constant 0.000000e+00 : f32
    %25 = vector.broadcast %cst_20 : f32 to vector<256x64xf32>
    %26 = arith.maximumf %24, %25 : vector<256x64xf32>
    %27 = arith.addf %26, %19 : vector<256x64xf32>
    %cst_21 = arith.constant 5.000000e-01 : f32
    %28 = vector.broadcast %cst_21 : f32 to vector<256x64xf32>
    %29 = arith.mulf %27, %28 : vector<256x64xf32>
    %c0_22 = arith.constant 0 : index
    %c0_23 = arith.constant 0 : index
    %30 = vector.load %arg9[%c0_22, %c0_23] : memref<64x16xf32, #tpu.memory_space<vmem>>, vector<64x16xf32>
    %cst_24 = arith.constant dense<0.000000e+00> : vector<256x16xf32>
    %31 = tpu.matmul %29, %30, %cst_24 {dimension_numbers = #tpu.dot_dimension_numbers<[1], [0], [0], [1], [0, 0, 1, 1], [], []>} : vector<256x64xf32>, vector<64x16xf32>, vector<256x16xf32> -> vector<256x16xf32>
    %c0_25 = arith.constant 0 : index
    %c0_26 = arith.constant 0 : index
    %32 = vector.load %arg10[%c0_25, %c0_26] : memref<1x16xf32, #tpu.memory_space<vmem>>, vector<1x16xf32>
    %33 = vector.broadcast %32 : vector<1x16xf32> to vector<256x16xf32>
    %34 = arith.addf %31, %33 : vector<256x16xf32>
    %cst_27 = arith.constant 0.000000e+00 : f32
    %35 = vector.broadcast %cst_27 : f32 to vector<256x16xf32>
    %36 = arith.maximumf %34, %35 : vector<256x16xf32>
    %c0_28 = arith.constant 0 : index
    %c0_29 = arith.constant 0 : index
    %c0_30 = arith.constant 0 : index
    %37 = vector.load %arg11[%c0_28, %c0_29, %c0_30] : memref<1x256x16xf32, #tpu.memory_space<vmem>>, vector<1x256x16xf32>
    %38 = vector.shape_cast %37 : vector<1x256x16xf32> to vector<256x16xf32>
    %39 = vector.shape_cast %36 : vector<256x16xf32> to vector<1x256x16xf32>
    tpu.vector_store %arg11[%c0_28, %c0_29, %c0_30], %39 {strides = array<i32>} : memref<1x256x16xf32, #tpu.memory_space<vmem>>, vector<1x256x16xf32>,
    return
  }
  func.func @transform_0(%arg0: i32, %arg1: i32) -> (i32, i32, i32) {
    %c0_i32 = arith.constant 0 : i32
    %c0_i32_0 = arith.constant 0 : i32
    return %arg0, %arg1, %c0_i32 : i32, i32, i32
  }
  func.func @transform_1(%arg0: i32, %arg1: i32) -> (i32, i32, i32) {
    %c0_i32 = arith.constant 0 : i32
    %c0_i32_0 = arith.constant 0 : i32
    %c0_i32_1 = arith.constant 0 : i32
    return %arg0, %c0_i32, %c0_i32_0 : i32, i32, i32
  }
  func.func @transform_2(%arg0: i32, %arg1: i32) -> (i32, i32) {
    %c0_i32 = arith.constant 0 : i32
    %c0_i32_0 = arith.constant 0 : i32
    %c0_i32_1 = arith.constant 0 : i32
    return %c0_i32, %c0_i32_0 : i32, i32
  }
  func.func @transform_3(%arg0: i32, %arg1: i32) -> (i32, i32) {
    %c0_i32 = arith.constant 0 : i32
    %c0_i32_0 = arith.constant 0 : i32
    %c0_i32_1 = arith.constant 0 : i32
    return %c0_i32, %c0_i32_0 : i32, i32
  }
  func.func @transform_4(%arg0: i32, %arg1: i32) -> (i32, i32) {
    %c0_i32 = arith.constant 0 : i32
    %c0_i32_0 = arith.constant 0 : i32
    %c0_i32_1 = arith.constant 0 : i32
    return %c0_i32, %c0_i32_0 : i32, i32
  }
  func.func @transform_5(%arg0: i32, %arg1: i32) -> (i32, i32) {
    %c0_i32 = arith.constant 0 : i32
    %c0_i32_0 = arith.constant 0 : i32
    %c0_i32_1 = arith.constant 0 : i32
    return %c0_i32, %c0_i32_0 : i32, i32
  }
  func.func @transform_6(%arg0: i32, %arg1: i32) -> (i32, i32) {
    %c0_i32 = arith.constant 0 : i32
    %c0_i32_0 = arith.constant 0 : i32
    %c0_i32_1 = arith.constant 0 : i32
    return %c0_i32, %c0_i32_0 : i32, i32
  }
  func.func @transform_7(%arg0: i32, %arg1: i32) -> (i32, i32) {
    %c0_i32 = arith.constant 0 : i32
    %c0_i32_0 = arith.constant 0 : i32
    %c0_i32_1 = arith.constant 0 : i32
    return %c0_i32, %c0_i32_0 : i32, i32
  }
  func.func @transform_8(%arg0: i32, %arg1: i32) -> (i32, i32) {
    %c0_i32 = arith.constant 0 : i32
    %c0_i32_0 = arith.constant 0 : i32
    %c0_i32_1 = arith.constant 0 : i32
    return %c0_i32, %c0_i32_0 : i32, i32
  }
  func.func @transform_9(%arg0: i32, %arg1: i32) -> (i32, i32, i32) {
    %c0_i32 = arith.constant 0 : i32
    %c0_i32_0 = arith.constant 0 : i32
    return %arg0, %arg1, %c0_i32 : i32, i32, i32
  }
}

</mosaic_0001>

<llo_original>
// kernel: tpu_custom_call.1
$region0: #{tpu_custom_call.1}
  #allocation0 [shape = 'u32[]', space=smem, size = 0x4, offset = 0x4, fixed_abs, tag = 'smem constant byte address 0x4 - core index']
  #allocation1 [shape = 'u32[144,128]{1,0:T(1,128)}', space=vmem, size = 0x12000, scoped, tag = 'internal scratch']
  %s0 = inlined_call_operand.vmem [shape: f32[2,256,4], index: 0, kind: input, shape index: {}]
  %s1 = inlined_call_operand.vmem [shape: f32[2,1,64], index: 1, kind: input, shape index: {}]
  %s2 = inlined_call_operand.vmem [shape: f32[4,64], index: 2, kind: input, shape index: {}]
  %s3 = inlined_call_operand.vmem [shape: f32[64,64], index: 3, kind: input, shape index: {}]
  %s4 = inlined_call_operand.vmem [shape: f32[1,64], index: 4, kind: input, shape index: {}]
  %s5 = inlined_call_operand.vmem [shape: f32[64,64], index: 5, kind: input, shape index: {}]
  %s6 = inlined_call_operand.vmem [shape: f32[1,64], index: 6, kind: input, shape index: {}]
  %s7 = inlined_call_operand.vmem [shape: f32[64,16], index: 7, kind: input, shape index: {}]
  %s8 = inlined_call_operand.vmem [shape: f32[1,16], index: 8, kind: input, shape index: {}]
  %s9 = inlined_call_operand.vmem [shape: f32[2,256,16], index: 9, kind: output, shape index: {}]
  %s10 = sld [smem:[#allocation0]]
  $region69: #{tpu_custom_call.1} parent=0
    _
  %s12 = ssub.s32 1, %s10
  %s13 = scalar_select 0, %s12, %s10
  loop: start=0, step=1, limit=4
  $region2: #{tpu_custom_call.1} parent=0 // loop_pre_header
    _
  $region3: #{tpu_custom_call.1} parent=0 // loop_header
    %s15 = sphi 0, %s19
    %p16 = scmp.ge.s32.totalorder %s15, 4
    %s22 = sphi 0, %s34
    %s23 = sphi 0, %s30
    %s24 = sphi 0, %s22
    %s25 = sphi 0, %s23
    %s26 = sphi 0, %s24
    %s27 = sphi 0, %s25
    %s39 = sphi 0, %s41
    %s42 = sphi 0, %s39
    %s43 = sphi 0, %s42
    %s59 = sphi 0, %s43
    %s65 = sphi 0, %s67
    %s68 = sphi 0, %s65
    %s69 = sphi 0, %s68
    %s85 = sphi 0, %s69
    %s89 = sphi 0, %s89
    %s91 = sphi 0, %s89
    %s92 = sphi 0, %s91
    %s106 = sphi 0, %s92
    %s110 = sphi 0, %s110
    %s112 = sphi 0, %s110
    %s113 = sphi 0, %s112
    %s127 = sphi 0, %s113
    %s131 = sphi 0, %s131
    %s133 = sphi 0, %s131
    %s134 = sphi 0, %s133
    %s148 = sphi 0, %s134
    %s152 = sphi 0, %s152
    %s154 = sphi 0, %s152
    %s155 = sphi 0, %s154
    %s169 = sphi 0, %s155
    %s173 = sphi 0, %s173
    %s175 = sphi 0, %s173
    %s176 = sphi 0, %s175
    %s190 = sphi 0, %s176
    %s194 = sphi 0, %s194
    %s196 = sphi 0, %s194
    %s197 = sphi 0, %s196
    %s211 = sphi 0, %s197
    %s215 = sphi 0, %s215
    %s217 = sphi 0, %s215
    %s218 = sphi 0, %s217
    %s232 = sphi 0, %s218
    %s240 = sphi 0, %s242
    %s243 = sphi 0, %s240
    %s244 = sphi 0, %s243
    %s260 = sphi 0, %s244
  $region4: #{tpu_custom_call.1} parent=0 // loop_header_branch
    %18 = sbr.rel (%p16) target = $region8
  $region5: #{tpu_custom_call.1} parent=0 // loop_body
    %s20 = ssub.s32 %s15, 1
    %s21 = ssub.s32 %s15, 2
    %s28 = sadd.s32 1, %s23
    %p29 = scmp.ge.s32.totalorder %s28, 1
    %s30 = scalar_select %p29, 0, %s28
    %s31 = sadd.s32 1, %s22
    %s32 = scalar_select %p29, %s31, %s22
    %p33 = scmp.ge.s32.totalorder %s32, 2
    %s34 = scalar_select %p33, 0, %s32
    %s35 = ssub.s32 %s22, %s34
    %s36 = ssub.s32 %s23, %s30
    %s37 = sor.u32 %s35, %s36
    %p38 = scmp.eq.s32.totalorder %s37, 0
    %s40 = sadd.s32 %s39, 1
    %s41 = scalar_select %p38, %s39, %s40
    %p44 = pneg %p38
    %p45 = scmp.eq.s32.totalorder %s15, 1
    %p46 = por %p44, %p45
    %p47 = scmp.ne.s32.totalorder %s39, %s42
    %p48 = scmp.eq.s32.totalorder %s15, 0
    %p49 = por %p47, %p48
    %p50 = scmp.ne.s32.totalorder %s39, %s42
    %p51 = scmp.eq.s32.totalorder %s20, 1
    %p52 = por %p50, %p51
    %p53 = scmp.ne.s32.totalorder %s42, %s43
    %p54 = scmp.eq.s32.totalorder %s20, 0
    %p55 = por %p53, %p54
    %p56 = scmp.ne.s32.totalorder %s42, %s43
    %p57 = scmp.eq.s32.totalorder %s21, 1
    %p58 = por %p56, %p57
    %p60 = scmp.ne.s32.totalorder %s43, %s59
    %p61 = scmp.eq.s32.totalorder %s21, 0
    %p62 = por %p60, %p61
    %s63 = ssub.s32 %s22, %s34
    %p64 = scmp.eq.s32.totalorder %s63, 0
    %s66 = sadd.s32 %s65, 1
    %s67 = scalar_select %p64, %s65, %s66
    %p70 = pneg %p64
    %p71 = scmp.eq.s32.totalorder %s15, 1
    %p72 = por %p70, %p71
    %p73 = scmp.ne.s32.totalorder %s65, %s68
    %p74 = scmp.eq.s32.totalorder %s15, 0
    %p75 = por %p73, %p74
    %p76 = scmp.ne.s32.totalorder %s65, %s68
    %p77 = scmp.eq.s32.totalorder %s20, 1
    %p78 = por %p76, %p77
    %p79 = scmp.ne.s32.totalorder %s68, %s69
    %p80 = scmp.eq.s32.totalorder %s20, 0
    %p81 = por %p79, %p80
    %p82 = scmp.ne.s32.totalorder %s68, %s69
    %p83 = scmp.eq.s32.totalorder %s21, 1
    %p84 = por %p82, %p83
    %p86 = scmp.ne.s32.totalorder %s69, %s85
    %p87 = scmp.eq.s32.totalorder %s21, 0
    %p88 = por %p86, %p87
    %s90 = sadd.s32 %s89, 1
    %p93 = scmp.eq.s32.totalorder %s15, 1
    %p94 = scmp.ne.s32.totalorder %s89, %s91
    %p95 = scmp.eq.s32.totalorder %s15, 0
    %p96 = por %p94, %p95
    %p97 = scmp.ne.s32.totalorder %s89, %s91
    %p98 = scmp.eq.s32.totalorder %s20, 1
    %p99 = por %p97, %p98
    %p100 = scmp.ne.s32.totalorder %s91, %s92
    %p101 = scmp.eq.s32.totalorder %s20, 0
    %p102 = por %p100, %p101
    %p103 = scmp.ne.s32.totalorder %s91, %s92
    %p104 = scmp.eq.s32.totalorder %s21, 1
    %p105 = por %p103, %p104
    %p107 = scmp.ne.s32.totalorder %s92, %s106
    %p108 = scmp.eq.s32.totalorder %s21, 0
    %p109 = por %p107, %p108
    %s111 = sadd.s32 %s110, 1
    %p114 = scmp.eq.s32.totalorder %s15, 1
    %p115 = scmp.ne.s32.totalorder %s110, %s112
    %p116 = scmp.eq.s32.totalorder %s15, 0
    %p117 = por %p115, %p116
    %p118 = scmp.ne.s32.totalorder %s110, %s112
    %p119 = scmp.eq.s32.totalorder %s20, 1
    %p120 = por %p118, %p119
    %p121 = scmp.ne.s32.totalorder %s112, %s113
    %p122 = scmp.eq.s32.totalorder %s20, 0
    %p123 = por %p121, %p122
    %p124 = scmp.ne.s32.totalorder %s112, %s113
    %p125 = scmp.eq.s32.totalorder %s21, 1
    %p126 = por %p124, %p125
    %p128 = scmp.ne.s32.totalorder %s113, %s127
    %p129 = scmp.eq.s32.totalorder %s21, 0
    %p130 = por %p128, %p129
    %s132 = sadd.s32 %s131, 1
    %p135 = scmp.eq.s32.totalorder %s15, 1
    %p136 = scmp.ne.s32.totalorder %s131, %s133
    %p137 = scmp.eq.s32.totalorder %s15, 0
    %p138 = por %p136, %p137
    %p139 = scmp.ne.s32.totalorder %s131, %s133
    %p140 = scmp.eq.s32.totalorder %s20, 1
    %p141 = por %p139, %p140
    %p142 = scmp.ne.s32.totalorder %s133, %s134
    %p143 = scmp.eq.s32.totalorder %s20, 0
    %p144 = por %p142, %p143
    %p145 = scmp.ne.s32.totalorder %s133, %s134
    %p146 = scmp.eq.s32.totalorder %s21, 1
    %p147 = por %p145, %p146
    %p149 = scmp.ne.s32.totalorder %s134, %s148
    %p150 = scmp.eq.s32.totalorder %s21, 0
    %p151 = por %p149, %p150
    %s153 = sadd.s32 %s152, 1
    %p156 = scmp.eq.s32.totalorder %s15, 1
    %p157 = scmp.ne.s32.totalorder %s152, %s154
    %p158 = scmp.eq.s32.totalorder %s15, 0
    %p159 = por %p157, %p158
    %p160 = scmp.ne.s32.totalorder %s152, %s154
    %p161 = scmp.eq.s32.totalorder %s20, 1
    %p162 = por %p160, %p161
    %p163 = scmp.ne.s32.totalorder %s154, %s155
    %p164 = scmp.eq.s32.totalorder %s20, 0
    %p165 = por %p163, %p164
    %p166 = scmp.ne.s32.totalorder %s154, %s155
    %p167 = scmp.eq.s32.totalorder %s21, 1
    %p168 = por %p166, %p167
    %p170 = scmp.ne.s32.totalorder %s155, %s169
    %p171 = scmp.eq.s32.totalorder %s21, 0
    %p172 = por %p170, %p171
    %s174 = sadd.s32 %s173, 1
    %p177 = scmp.eq.s32.totalorder %s15, 1
    %p178 = scmp.ne.s32.totalorder %s173, %s175
    %p179 = scmp.eq.s32.totalorder %s15, 0
    %p180 = por %p178, %p179
    %p181 = scmp.ne.s32.totalorder %s173, %s175
    %p182 = scmp.eq.s32.totalorder %s20, 1
    %p183 = por %p181, %p182
    %p184 = scmp.ne.s32.totalorder %s175, %s176
    %p185 = scmp.eq.s32.totalorder %s20, 0
    %p186 = por %p184, %p185
    %p187 = scmp.ne.s32.totalorder %s175, %s176
    %p188 = scmp.eq.s32.totalorder %s21, 1
    %p189 = por %p187, %p188
    %p191 = scmp.ne.s32.totalorder %s176, %s190
    %p192 = scmp.eq.s32.totalorder %s21, 0
    %p193 = por %p191, %p192
    %s195 = sadd.s32 %s194, 1
    %p198 = scmp.eq.s32.totalorder %s15, 1
    %p199 = scmp.ne.s32.totalorder %s194, %s196
    %p200 = scmp.eq.s32.totalorder %s15, 0
    %p201 = por %p199, %p200
    %p202 = scmp.ne.s32.totalorder %s194, %s196
    %p203 = scmp.eq.s32.totalorder %s20, 1
    %p204 = por %p202, %p203
    %p205 = scmp.ne.s32.totalorder %s196, %s197
    %p206 = scmp.eq.s32.totalorder %s20, 0
    %p207 = por %p205, %p206
    %p208 = scmp.ne.s32.totalorder %s196, %s197
    %p209 = scmp.eq.s32.totalorder %s21, 1
    %p210 = por %p208, %p209
    %p212 = scmp.ne.s32.totalorder %s197, %s211
    %p213 = scmp.eq.s32.totalorder %s21, 0
    %p214 = por %p212, %p213
    %s216 = sadd.s32 %s215, 1
    %p219 = scmp.eq.s32.totalorder %s15, 1
    %p220 = scmp.ne.s32.totalorder %s215, %s217
    %p221 = scmp.eq.s32.totalorder %s15, 0
    %p222 = por %p220, %p221
    %p223 = scmp.ne.s32.totalorder %s215, %s217
    %p224 = scmp.eq.s32.totalorder %s20, 1
    %p225 = por %p223, %p224
    %p226 = scmp.ne.s32.totalorder %s217, %s218
    %p227 = scmp.eq.s32.totalorder %s20, 0
    %p228 = por %p226, %p227
    %p229 = scmp.ne.s32.totalorder %s217, %s218
    %p230 = scmp.eq.s32.totalorder %s21, 1
    %p231 = por %p229, %p230
    %p233 = scmp.ne.s32.totalorder %s218, %s232
    %p234 = scmp.eq.s32.totalorder %s21, 0
    %p235 = por %p233, %p234
    %s236 = ssub.s32 %s22, %s34
    %s237 = ssub.s32 %s23, %s30
    %s238 = sor.u32 %s236, %s237
    %p239 = scmp.eq.s32.totalorder %s238, 0
    %s241 = sadd.s32 %s240, 1
    %s242 = scalar_select %p239, %s240, %s241
    %p245 = pneg %p239
    %p246 = scmp.eq.s32.totalorder %s15, 1
    %p247 = por %p245, %p246
    %p248 = scmp.ne.s32.totalorder %s240, %s243
    %p249 = scmp.eq.s32.totalorder %s15, 0
    %p250 = por %p248, %p249
    %p251 = scmp.ne.s32.totalorder %s240, %s243
    %p252 = scmp.eq.s32.totalorder %s20, 1
    %p253 = por %p251, %p252
    %p254 = scmp.ne.s32.totalorder %s243, %s244
    %p255 = scmp.eq.s32.totalorder %s20, 0
    %p256 = por %p254, %p255
    %p257 = scmp.ne.s32.totalorder %s243, %s244
    %p258 = scmp.eq.s32.totalorder %s21, 1
    %p259 = por %p257, %p258
    %p261 = scmp.ne.s32.totalorder %s244, %s260
    %p262 = scmp.eq.s32.totalorder %s21, 0
    %p263 = por %p261, %p262
    %p264 = scmp.le.s32.totalorder 1, %s15
    %p265 = scmp.lt.s32.totalorder %s15, 3
    %p266 = pnand %p264, %p265
    %p267 = pneg %p266
    // Predicated region
    $region9: #{tpu_custom_call.1} parent=5 // pred_check
      _
    $region10: #{tpu_custom_call.1} parent=5 // pred_check_branch
      %269 = sbr.rel (%p266) target = $region12
    $region11: #{tpu_custom_call.1} parent=5 // pred_region
      %s270 = ssub.s32 %s15, 1
      // Predicated region
      $region13: #{tpu_custom_call.1} parent=11 // pred_check
        %p271 = pneg %p102
      $region14: #{tpu_custom_call.1} parent=11 // pred_check_branch
        %273 = sbr.rel (%p271) target = $region16
      $region15: #{tpu_custom_call.1} parent=11 // pred_region
        _
      $region16: #{tpu_custom_call.1} parent=11 // pred_fallthru
        _
      // Predicated region
      $region17: #{tpu_custom_call.1} parent=11 // pred_check
        %p274 = pneg %p123
      $region18: #{tpu_custom_call.1} parent=11 // pred_check_branch
        %276 = sbr.rel (%p274) target = $region20
      $region19: #{tpu_custom_call.1} parent=11 // pred_region
        _
      $region20: #{tpu_custom_call.1} parent=11 // pred_fallthru
        _
      // Predicated region
      $region21: #{tpu_custom_call.1} parent=11 // pred_check
        %p277 = pneg %p144
      $region22: #{tpu_custom_call.1} parent=11 // pred_check_branch
        %279 = sbr.rel (%p277) target = $region24
      $region23: #{tpu_custom_call.1} parent=11 // pred_region
        _
      $region24: #{tpu_custom_call.1} parent=11 // pred_fallthru
        _
      // Predicated region
      $region25: #{tpu_custom_call.1} parent=11 // pred_check
        %p280 = pneg %p165
      $region26: #{tpu_custom_call.1} parent=11 // pred_check_branch
        %282 = sbr.rel (%p280) target = $region28
      $region27: #{tpu_custom_call.1} parent=11 // pred_region
        _
      $region28: #{tpu_custom_call.1} parent=11 // pred_fallthru
        _
      // Predicated region
      $region29: #{tpu_custom_call.1} parent=11 // pred_check
        %p283 = pneg %p186
      $region30: #{tpu_custom_call.1} parent=11 // pred_check_branch
        %285 = sbr.rel (%p283) target = $region32
      $region31: #{tpu_custom_call.1} parent=11 // pred_region
        _
      $region32: #{tpu_custom_call.1} parent=11 // pred_fallthru
        _
      // Predicated region
      $region33: #{tpu_custom_call.1} parent=11 // pred_check
        %p286 = pneg %p207
      $region34: #{tpu_custom_call.1} parent=11 // pred_check_branch
        %288 = sbr.rel (%p286) target = $region36
      $region35: #{tpu_custom_call.1} parent=11 // pred_region
        _
      $region36: #{tpu_custom_call.1} parent=11 // pred_fallthru
        _
      // Predicated region
      $region37: #{tpu_custom_call.1} parent=11 // pred_check
        %p289 = pneg %p228
      $region38: #{tpu_custom_call.1} parent=11 // pred_check_branch
        %291 = sbr.rel (%p289) target = $region40
      $region39: #{tpu_custom_call.1} parent=11 // pred_region
        _
      $region40: #{tpu_custom_call.1} parent=11 // pred_fallthru
        _
    $region12: #{tpu_custom_call.1} parent=5 // pred_fallthru
      _
    %p292 = scmp.lt.s32.totalorder %s15, 2
    // Predicated region
    $region41: #{tpu_custom_call.1} parent=5 // pred_check
      %p293 = pneg %p292
    $region42: #{tpu_custom_call.1} parent=5 // pred_check_branch
      %295 = sbr.rel (%p293) target = $region44
    $region43: #{tpu_custom_call.1} parent=5 // pred_region
      // Predicated region
      $region45: #{tpu_custom_call.1} parent=43 // pred_check
        %p296 = pneg %p49
      $region46: #{tpu_custom_call.1} parent=43 // pred_check_branch
        %298 = sbr.rel (%p296) target = $region48
      $region47: #{tpu_custom_call.1} parent=43 // pred_region
        %s299 = smul.u32 32, %s23
        %p300 = scmp.lt.s32.totalorder %s22, 1
        %s301 = scalar_select %p300, %s22, 1
        %p302 = scmp.lt.s32.totalorder %s299, 31
        %s303 = scalar_select %p302, %s299, 31
        %s304 = smul.addr %s301, 32
        %s305 = sadd.s32 %s303, %s304
        %s306 = smul.addr %s305, 8
        %s307 = scalar_lea.vmem %s0, %s306
        %s308 = smul.u32 32, %s23
      $region48: #{tpu_custom_call.1} parent=43 // pred_fallthru
        _
      // Predicated region
      $region49: #{tpu_custom_call.1} parent=43 // pred_check
        %p309 = pneg %p75
      $region50: #{tpu_custom_call.1} parent=43 // pred_check_branch
        %311 = sbr.rel (%p309) target = $region52
      $region51: #{tpu_custom_call.1} parent=43 // pred_region
        %p312 = scmp.lt.s32.totalorder %s22, 1
        %s313 = scalar_select %p312, %s22, 1
        %s314 = scalar_lea.vmem %s1, %s313
      $region52: #{tpu_custom_call.1} parent=43 // pred_fallthru
        _
    $region44: #{tpu_custom_call.1} parent=5 // pred_fallthru
      _
    %p315 = scmp.le.s32.totalorder 1, %s15
    %p316 = scmp.lt.s32.totalorder %s15, 3
    %p317 = pnand %p315, %p316
    %p318 = pneg %p317
    // Predicated region
    $region53: #{tpu_custom_call.1} parent=5 // pred_check
      _
    $region54: #{tpu_custom_call.1} parent=5 // pred_check_branch
      %320 = sbr.rel (%p317) target = $region56
    $region55: #{tpu_custom_call.1} parent=5 // pred_region
      %s321 = ssub.s32 %s15, 1
      %s322 = smul.u32 32, %s25
      %p323 = scmp.lt.s32.totalorder %s24, 1
      %s324 = scalar_select %p323, %s24, 1
      %p325 = scmp.lt.s32.totalorder %s322, 31
      %s326 = scalar_select %p325, %s322, 31
      %s327 = smul.addr %s324, 32
      %s328 = sadd.s32 %s326, %s327
      %s329 = smul.addr %s328, 8
      %s330 = scalar_lea.vmem %s0, %s329
      %p331 = pneg %p55
      %p332 = pneg %p52
      %p333 = scmp.lt.s32.totalorder %s24, 1
      %s334 = scalar_select %p333, %s24, 1
      %s335 = scalar_lea.vmem %s1, %s334
      %p336 = pneg %p81
      %p337 = pneg %p78
      %p338 = pneg %p102
      %p339 = pneg %p99
      %p340 = pneg %p123
      %p341 = pneg %p120
      %p342 = pneg %p144
      %p343 = pneg %p141
      %p344 = pneg %p165
      %p345 = pneg %p162
      %p346 = pneg %p186
      %p347 = pneg %p183
      %p348 = pneg %p207
      %p349 = pneg %p204
      %p350 = pneg %p228
      %p351 = pneg %p225
      %p352 = pneg %p256
      %p353 = pneg %p253
      %s354 = smul.u32 32, %s25
      %p355 = scmp.lt.s32.totalorder %s24, 1
      %s356 = scalar_select %p355, %s24, 1
      %p357 = scmp.lt.s32.totalorder %s354, 31
      %s358 = scalar_select %p357, %s354, 31
      %s359 = smul.addr %s356, 32
      %s360 = sadd.s32 %s358, %s359
      %s361 = smul.addr %s360, 8
      %s362 = scalar_lea.vmem %s9, %s361
      %s363 = smul.u32 32, %s25
      %p364 = scmp.lt.s32.totalorder %s24, 1
      %s365 = scalar_select %p364, %s24, 1
      %p366 = scmp.lt.s32.totalorder %s363, 31
      %s367 = scalar_select %p366, %s363, 31
      %s368 = smul.addr %s365, 32
      %s369 = sadd.s32 %s367, %s368
      %s370 = smul.addr %s369, 8
      %s371 = scalar_lea.vmem %s0, %s370
      %s372 = smul.u32 32, %s25
      %p373 = scmp.lt.s32.totalorder %s24, 1
      %s374 = scalar_select %p373, %s24, 1
      %s375 = scalar_lea.vmem %s1, %s374
      %s376 = smul.u32 32, %s25
      %p377 = scmp.lt.s32.totalorder %s24, 1
      %s378 = scalar_select %p377, %s24, 1
      %p379 = scmp.lt.s32.totalorder %s376, 31
      %s380 = scalar_select %p379, %s376, 31
      %s381 = smul.addr %s378, 32
      %s382 = sadd.s32 %s380, %s381
      %s383 = smul.addr %s382, 8
      %s384 = scalar_lea.vmem %s9, %s383
      %s385 = smul.u32 32, %s25
      %v386 = vld [vmem:[%s371] sm:$0xff]
      %v387 = vld [vmem:[%s371 + $0x8] sm:$0xff]
      %v388 = vld [vmem:[%s371 + $0x10] sm:$0xff]
      %v389 = vld [vmem:[%s371 + $0x18] sm:$0xff]
      %v390 = vld [vmem:[%s371 + $0x20] sm:$0xff]
      %v391 = vld [vmem:[%s371 + $0x28] sm:$0xff]
      %v392 = vld [vmem:[%s371 + $0x30] sm:$0xff]
      %v393 = vld [vmem:[%s371 + $0x38] sm:$0xff]
      %v394 = vld [vmem:[%s371 + $0x40] sm:$0xff]
      %v395 = vld [vmem:[%s371 + $0x48] sm:$0xff]
      %v396 = vld [vmem:[%s371 + $0x50] sm:$0xff]
      %v397 = vld [vmem:[%s371 + $0x58] sm:$0xff]
      %v398 = vld [vmem:[%s371 + $0x60] sm:$0xff]
      %v399 = vld [vmem:[%s371 + $0x68] sm:$0xff]
      %v400 = vld [vmem:[%s371 + $0x70] sm:$0xff]
      %v401 = vld [vmem:[%s371 + $0x78] sm:$0xff]
      %v402 = vld [vmem:[%s371 + $0x80] sm:$0xff]
      %v403 = vld [vmem:[%s371 + $0x88] sm:$0xff]
      %v404 = vld [vmem:[%s371 + $0x90] sm:$0xff]
      %v405 = vld [vmem:[%s371 + $0x98] sm:$0xff]
      %v406 = vld [vmem:[%s371 + $0xa0] sm:$0xff]
      %v407 = vld [vmem:[%s371 + $0xa8] sm:$0xff]
      %v408 = vld [vmem:[%s371 + $0xb0] sm:$0xff]
      %v409 = vld [vmem:[%s371 + $0xb8] sm:$0xff]
      %v410 = vld [vmem:[%s371 + $0xc0] sm:$0xff]
      %v411 = vld [vmem:[%s371 + $0xc8] sm:$0xff]
      %v412 = vld [vmem:[%s371 + $0xd0] sm:$0xff]
      %v413 = vld [vmem:[%s371 + $0xd8] sm:$0xff]
      %v414 = vld [vmem:[%s371 + $0xe0] sm:$0xff]
      %v415 = vld [vmem:[%s371 + $0xe8] sm:$0xff]
      %v416 = vld [vmem:[%s371 + $0xf0] sm:$0xff]
      %v417 = vld [vmem:[%s371 + $0xf8] sm:$0xff]
      %v418 = vld [vmem:[%s2] sm:$0xf]
      %v419 = vld [vmem:[%s375] sm:$0x1]
      %v421 = vlaneseq
      %v422 = vshrl.u32 %v421, 7
      %v423 = vsub.s32 0, %v422
      %v424 = vrot.slane %v419, %v423
      %vm426 = vcmask 31744
      %v428 = vsel %vm426, %v386, 0
      %v431 = vsel %vm426, %v387, 0
      %v434 = vsel %vm426, %v388, 0
      %v437 = vsel %vm426, %v389, 0
      %v440 = vsel %vm426, %v390, 0
      %v443 = vsel %vm426, %v391, 0
      %v446 = vsel %vm426, %v392, 0
      %v449 = vsel %vm426, %v393, 0
      %v452 = vsel %vm426, %v394, 0
      %v455 = vsel %vm426, %v395, 0
      %v458 = vsel %vm426, %v396, 0
      %v461 = vsel %vm426, %v397, 0
      %v464 = vsel %vm426, %v398, 0
      %v467 = vsel %vm426, %v399, 0
      %v470 = vsel %vm426, %v400, 0
      %v473 = vsel %vm426, %v401, 0
      %v476 = vsel %vm426, %v402, 0
      %v479 = vsel %vm426, %v403, 0
      %v482 = vsel %vm426, %v404, 0
      %v485 = vsel %vm426, %v405, 0
      %v488 = vsel %vm426, %v406, 0
      %v491 = vsel %vm426, %v407, 0
      %v494 = vsel %vm426, %v408, 0
      %v497 = vsel %vm426, %v409, 0
      %v500 = vsel %vm426, %v410, 0
      %v503 = vsel %vm426, %v411, 0
      %v506 = vsel %vm426, %v412, 0
      %v509 = vsel %vm426, %v413, 0
      %v512 = vsel %vm426, %v414, 0
      %v515 = vsel %vm426, %v415, 0
      %v518 = vsel %vm426, %v416, 0
      %v521 = vsel %vm426, %v417, 0
      %vm523 = vcmask 1043456
      %v525 = vsel %vm523, %v418, 0
      %527 = vmatprep.subr.mxu0 0.0
      %528 = vmatpush1.msra.mxu0 %v525
      %529 = vmatprep.subr.mxu0 0.0
      %530 = vmatpush1.msra.mxu0 0.0
      %531 = vmatprep.subr.mxu0 0.0
      %532 = vmatpush1.msra.mxu0 0.0
      %533 = vmatprep.subr.mxu0 0.0
      %534 = vmatpush1.msra.mxu0 0.0
      %535 = vmatprep.subr.mxu0 0.0
      %536 = vmatpush1.msra.mxu0 0.0
      %537 = vmatprep.subr.mxu0 0.0
      %538 = vmatpush1.msra.mxu0 0.0
      %539 = vmatprep.subr.mxu0 0.0
      %540 = vmatpush1.msra.mxu0 0.0
      %541 = vmatprep.subr.mxu0 0.0
      %542 = vmatpush1.msra.mxu0 0.0
      %543 = vmatprep.subr.mxu0 0.0
      %544 = vmatpush1.msra.mxu0 0.0
      %545 = vmatprep.subr.mxu0 0.0
      %546 = vmatpush1.msra.mxu0 0.0
      %547 = vmatprep.subr.mxu0 0.0
      %548 = vmatpush1.msra.mxu0 0.0
      %549 = vmatprep.subr.mxu0 0.0
      %550 = vmatpush1.msra.mxu0 0.0
      %551 = vmatprep.subr.mxu0 0.0
      %552 = vmatpush1.msra.mxu0 0.0
      %553 = vmatprep.subr.mxu0 0.0
      %554 = vmatpush1.msra.mxu0 0.0
      %555 = vmatprep.subr.mxu0 0.0
      %556 = vmatpush1.msra.mxu0 0.0
      %557 = vmatprep.subr.mxu0 0.0
      %558 = vmatpush1.msra.mxu0 0.0
      %559 = vmatprep.subr.mxu0 0.0
      %560 = vmatpush1.msra.mxu0 0.0
      %561 = vmatprep.subr.mxu0 0.0
      %562 = vmatpush1.msra.mxu0 0.0
      %563 = vmatprep.subr.mxu0 0.0
      %564 = vmatpush1.msra.mxu0 0.0
      %565 = vmatprep.subr.mxu0 0.0
      %566 = vmatpush1.msra.mxu0 0.0
      %567 = vmatprep.subr.mxu0 0.0
      %568 = vmatpush1.msra.mxu0 0.0
      %569 = vmatprep.subr.mxu0 0.0
      %570 = vmatpush1.msra.mxu0 0.0
      %571 = vmatprep.subr.mxu0 0.0
      %572 = vmatpush1.msra.mxu0 0.0
      %573 = vmatprep.subr.mxu0 0.0
      %574 = vmatpush1.msra.mxu0 0.0
      %575 = vmatprep.subr.mxu0 0.0
      %576 = vmatpush1.msra.mxu0 0.0
      %577 = vmatprep.subr.mxu0 0.0
      %578 = vmatpush1.msra.mxu0 0.0
      %579 = vmatprep.subr.mxu0 0.0
      %580 = vmatpush1.msra.mxu0 0.0
      %581 = vmatprep.subr.mxu0 0.0
      %582 = vmatpush1.msra.mxu0 0.0
      %583 = vmatprep.subr.mxu0 0.0
      %584 = vmatpush1.msra.mxu0 0.0
      %585 = vmatprep.subr.mxu0 0.0
      %586 = vmatpush1.msra.mxu0 0.0
      %587 = vmatprep.subr.mxu0 0.0
      %588 = vmatpush1.msra.mxu0 0.0
      %589 = vmatprep.subr.mxu0 0.0
      %590 = vmatpush1.msra.mxu0 0.0
      %591 = vmatprep.mubr.f32.mxu0 0.0
      %592 = vmatmul.mubr.f32.gmra.mrb[0].mxu0 %v428
      %v593 = vpop.f32.mrb[0].mxu0
      %v594 = vadd.f32 %v424, %v593
      %v595 = vpop.f32.mrb[0].mxu0
      %596 = vmatprep.mubr.f32.mxu0 0.0
      %597 = vmatmul.mubr.f32.gmra.mrb[0].mxu0 %v431
      %v598 = vpop.f32.mrb[0].mxu0
      %v599 = vadd.f32 %v424, %v598
      %v600 = vpop.f32.mrb[0].mxu0
      %601 = vmatprep.mubr.f32.mxu0 0.0
      %602 = vmatmul.mubr.f32.gmra.mrb[0].mxu0 %v434
      %v603 = vpop.f32.mrb[0].mxu0
      %v604 = vadd.f32 %v424, %v603
      %v605 = vpop.f32.mrb[0].mxu0
      %606 = vmatprep.mubr.f32.mxu0 0.0
      %607 = vmatmul.mubr.f32.gmra.mrb[0].mxu0 %v437
      %v608 = vpop.f32.mrb[0].mxu0
      %v609 = vadd.f32 %v424, %v608
      %v610 = vpop.f32.mrb[0].mxu0
      %611 = vmatprep.mubr.f32.mxu0 0.0
      %612 = vmatmul.mubr.f32.gmra.mrb[0].mxu0 %v440
      %v613 = vpop.f32.mrb[0].mxu0
      %v614 = vadd.f32 %v424, %v613
      %v615 = vpop.f32.mrb[0].mxu0
      %616 = vmatprep.mubr.f32.mxu0 0.0
      %617 = vmatmul.mubr.f32.gmra.mrb[0].mxu0 %v443
      %v618 = vpop.f32.mrb[0].mxu0
      %v619 = vadd.f32 %v424, %v618
      %v620 = vpop.f32.mrb[0].mxu0
      %621 = vmatprep.mubr.f32.mxu0 0.0
      %622 = vmatmul.mubr.f32.gmra.mrb[0].mxu0 %v446
      %v623 = vpop.f32.mrb[0].mxu0
      %v624 = vadd.f32 %v424, %v623
      %v625 = vpop.f32.mrb[0].mxu0
      %626 = vmatprep.mubr.f32.mxu0 0.0
      %627 = vmatmul.mubr.f32.gmra.mrb[0].mxu0 %v449
      %v628 = vpop.f32.mrb[0].mxu0
      %v629 = vadd.f32 %v424, %v628
      %v630 = vpop.f32.mrb[0].mxu0
      %631 = vmatprep.mubr.f32.mxu0 0.0
      %632 = vmatmul.mubr.f32.gmra.mrb[0].mxu0 %v452
      %v633 = vpop.f32.mrb[0].mxu0
      %v634 = vadd.f32 %v424, %v633
      %v635 = vpop.f32.mrb[0].mxu0
      %636 = vmatprep.mubr.f32.mxu0 0.0
      %637 = vmatmul.mubr.f32.gmra.mrb[0].mxu0 %v455
      %v638 = vpop.f32.mrb[0].mxu0
      %v639 = vadd.f32 %v424, %v638
      %v640 = vpop.f32.mrb[0].mxu0
      %641 = vmatprep.mubr.f32.mxu0 0.0
      %642 = vmatmul.mubr.f32.gmra.mrb[0].mxu0 %v458
      %v643 = vpop.f32.mrb[0].mxu0
      %v644 = vadd.f32 %v424, %v643
      %v645 = vpop.f32.mrb[0].mxu0
      %646 = vmatprep.mubr.f32.mxu0 0.0
      %647 = vmatmul.mubr.f32.gmra.mrb[0].mxu0 %v461
      %v648 = vpop.f32.mrb[0].mxu0
      %v649 = vadd.f32 %v424, %v648
      %v650 = vpop.f32.mrb[0].mxu0
      %651 = vmatprep.mubr.f32.mxu0 0.0
      %652 = vmatmul.mubr.f32.gmra.mrb[0].mxu0 %v464
      %v653 = vpop.f32.mrb[0].mxu0
      %v654 = vadd.f32 %v424, %v653
      %v655 = vpop.f32.mrb[0].mxu0
      %656 = vmatprep.mubr.f32.mxu0 0.0
      %657 = vmatmul.mubr.f32.gmra.mrb[0].mxu0 %v467
      %v658 = vpop.f32.mrb[0].mxu0
      %v659 = vadd.f32 %v424, %v658
      %v660 = vpop.f32.mrb[0].mxu0
      %661 = vmatprep.mubr.f32.mxu0 0.0
      %662 = vmatmul.mubr.f32.gmra.mrb[0].mxu0 %v470
      %v663 = vpop.f32.mrb[0].mxu0
      %v664 = vadd.f32 %v424, %v663
      %v665 = vpop.f32.mrb[0].mxu0
      %666 = vmatprep.mubr.f32.mxu0 0.0
      %667 = vmatmul.mubr.f32.gmra.mrb[0].mxu0 %v473
      %v668 = vpop.f32.mrb[0].mxu0
      %v669 = vadd.f32 %v424, %v668
      %v670 = vpop.f32.mrb[0].mxu0
      %671 = vmatprep.mubr.f32.mxu0 0.0
      %672 = vmatmul.mubr.f32.gmra.mrb[0].mxu0 %v476
      %v673 = vpop.f32.mrb[0].mxu0
      %v674 = vadd.f32 %v424, %v673
      %v675 = vpop.f32.mrb[0].mxu0
      %676 = vmatprep.mubr.f32.mxu0 0.0
      %677 = vmatmul.mubr.f32.gmra.mrb[0].mxu0 %v479
      %v678 = vpop.f32.mrb[0].mxu0
      %v679 = vadd.f32 %v424, %v678
      %v680 = vpop.f32.mrb[0].mxu0
      %681 = vmatprep.mubr.f32.mxu0 0.0
      %682 = vmatmul.mubr.f32.gmra.mrb[0].mxu0 %v482
      %v683 = vpop.f32.mrb[0].mxu0
      %v684 = vadd.f32 %v424, %v683
      %v685 = vpop.f32.mrb[0].mxu0
      %686 = vmatprep.mubr.f32.mxu0 0.0
      %687 = vmatmul.mubr.f32.gmra.mrb[0].mxu0 %v485
      %v688 = vpop.f32.mrb[0].mxu0
      %v689 = vadd.f32 %v424, %v688
      %v690 = vpop.f32.mrb[0].mxu0
      %691 = vmatprep.mubr.f32.mxu0 0.0
      %692 = vmatmul.mubr.f32.gmra.mrb[0].mxu0 %v488
      %v693 = vpop.f32.mrb[0].mxu0
      %v694 = vadd.f32 %v424, %v693
      %v695 = vpop.f32.mrb[0].mxu0
      %696 = vmatprep.mubr.f32.mxu0 0.0
      %697 = vmatmul.mubr.f32.gmra.mrb[0].mxu0 %v491
      %v698 = vpop.f32.mrb[0].mxu0
      %v699 = vadd.f32 %v424, %v698
      %v700 = vpop.f32.mrb[0].mxu0
      %701 = vmatprep.mubr.f32.mxu0 0.0
      %702 = vmatmul.mubr.f32.gmra.mrb[0].mxu0 %v494
      %v703 = vpop.f32.mrb[0].mxu0
      %v704 = vadd.f32 %v424, %v703
      %v705 = vpop.f32.mrb[0].mxu0
      %706 = vmatprep.mubr.f32.mxu0 0.0
      %707 = vmatmul.mubr.f32.gmra.mrb[0].mxu0 %v497
      %v708 = vpop.f32.mrb[0].mxu0
      %v709 = vadd.f32 %v424, %v708
      %v710 = vpop.f32.mrb[0].mxu0
      %711 = vmatprep.mubr.f32.mxu0 0.0
      %712 = vmatmul.mubr.f32.gmra.mrb[0].mxu0 %v500
      %v713 = vpop.f32.mrb[0].mxu0
      %v714 = vadd.f32 %v424, %v713
      %v715 = vpop.f32.mrb[0].mxu0
      %716 = vmatprep.mubr.f32.mxu0 0.0
      %717 = vmatmul.mubr.f32.gmra.mrb[0].mxu0 %v503
      %v718 = vpop.f32.mrb[0].mxu0
      %v719 = vadd.f32 %v424, %v718
      %v720 = vpop.f32.mrb[0].mxu0
      %721 = vmatprep.mubr.f32.mxu0 0.0
      %722 = vmatmul.mubr.f32.gmra.mrb[0].mxu0 %v506
      %v723 = vpop.f32.mrb[0].mxu0
      %v724 = vadd.f32 %v424, %v723
      %v725 = vpop.f32.mrb[0].mxu0
      %726 = vmatprep.mubr.f32.mxu0 0.0
      %727 = vmatmul.mubr.f32.gmra.mrb[0].mxu0 %v509
      %v728 = vpop.f32.mrb[0].mxu0
      %v729 = vadd.f32 %v424, %v728
      %v730 = vpop.f32.mrb[0].mxu0
      %731 = vmatprep.mubr.f32.mxu0 0.0
      %732 = vmatmul.mubr.f32.gmra.mrb[0].mxu0 %v512
      %v733 = vpop.f32.mrb[0].mxu0
      %v734 = vadd.f32 %v424, %v733
      %v735 = vpop.f32.mrb[0].mxu0
      %736 = vmatprep.mubr.f32.mxu0 0.0
      %737 = vmatmul.mubr.f32.gmra.mrb[0].mxu0 %v515
      %v738 = vpop.f32.mrb[0].mxu0
      %v739 = vadd.f32 %v424, %v738
      %v740 = vpop.f32.mrb[0].mxu0
      %741 = vmatprep.mubr.f32.mxu0 0.0
      %742 = vmatmul.mubr.f32.gmra.mrb[0].mxu0 %v518
      %v743 = vpop.f32.mrb[0].mxu0
      %v744 = vadd.f32 %v424, %v743
      %v745 = vpop.f32.mrb[0].mxu0
      %746 = vmatprep.mubr.f32.mxu0 0.0
      %747 = vmatmul.mubr.f32.gmra.mrb[0].mxu0 %v521
      %v748 = vpop.f32.mrb[0].mxu0
      %v749 = vadd.f32 %v424, %v748
      %v750 = vpop.f32.mrb[0].mxu0
      %751 = vdwg.mxu0
      %v752 = vmax.f32 %v594, 0.0
      %v753 = vmax.f32 %v599, 0.0
      %v754 = vmax.f32 %v604, 0.0
      %v755 = vmax.f32 %v609, 0.0
      %v756 = vmax.f32 %v614, 0.0
      %v757 = vmax.f32 %v619, 0.0
      %v758 = vmax.f32 %v624, 0.0
      %v759 = vmax.f32 %v629, 0.0
      %v760 = vmax.f32 %v634, 0.0
      %v761 = vmax.f32 %v639, 0.0
      %v762 = vmax.f32 %v644, 0.0
      %v763 = vmax.f32 %v649, 0.0
      %v764 = vmax.f32 %v654, 0.0
      %v765 = vmax.f32 %v659, 0.0
      %v766 = vmax.f32 %v664, 0.0
      %v767 = vmax.f32 %v669, 0.0
      %v768 = vmax.f32 %v674, 0.0
      %v769 = vmax.f32 %v679, 0.0
      %v770 = vmax.f32 %v684, 0.0
      %v771 = vmax.f32 %v689, 0.0
      %v772 = vmax.f32 %v694, 0.0
      %v773 = vmax.f32 %v699, 0.0
      %v774 = vmax.f32 %v704, 0.0
      %v775 = vmax.f32 %v709, 0.0
      %v776 = vmax.f32 %v714, 0.0
      %v777 = vmax.f32 %v719, 0.0
      %v778 = vmax.f32 %v724, 0.0
      %v779 = vmax.f32 %v729, 0.0
      %v780 = vmax.f32 %v734, 0.0
      %v781 = vmax.f32 %v739, 0.0
      %v782 = vmax.f32 %v744, 0.0
      %v783 = vmax.f32 %v749, 0.0
      %v784 = vld [vmem:[%s3] sm:$0xff]
      %v785 = vld [vmem:[%s3 + $0x8] sm:$0xff]
      %v786 = vld [vmem:[%s3 + $0x10] sm:$0xff]
      %v787 = vld [vmem:[%s3 + $0x18] sm:$0xff]
      %v788 = vld [vmem:[%s3 + $0x20] sm:$0xff]
      %v789 = vld [vmem:[%s3 + $0x28] sm:$0xff]
      %v790 = vld [vmem:[%s3 + $0x30] sm:$0xff]
      %v791 = vld [vmem:[%s3 + $0x38] sm:$0xff]
      %v792 = vld [vmem:[%s4] sm:$0x1]
      %v794 = vlaneseq
      %v795 = vshrl.u32 %v794, 7
      %v796 = vsub.s32 0, %v795
      %v797 = vrot.slane %v792, %v796
      %vm799 = vcmask 523264
      %v801 = vsel %vm799, %v752, 0
      %v804 = vsel %vm799, %v753, 0
      %v807 = vsel %vm799, %v754, 0
      %v810 = vsel %vm799, %v755, 0
      %v813 = vsel %vm799, %v756, 0
      %v816 = vsel %vm799, %v757, 0
      %v819 = vsel %vm799, %v758, 0
      %v822 = vsel %vm799, %v759, 0
      %v825 = vsel %vm799, %v760, 0
      %v828 = vsel %vm799, %v761, 0
      %v831 = vsel %vm799, %v762, 0
      %v834 = vsel %vm799, %v763, 0
      %v837 = vsel %vm799, %v764, 0
      %v840 = vsel %vm799, %v765, 0
      %v843 = vsel %vm799, %v766, 0
      %v846 = vsel %vm799, %v767, 0
      %v849 = vsel %vm799, %v768, 0
      %v852 = vsel %vm799, %v769, 0
      %v855 = vsel %vm799, %v770, 0
      %v858 = vsel %vm799, %v771, 0
      %v861 = vsel %vm799, %v772, 0
      %v864 = vsel %vm799, %v773, 0
      %v867 = vsel %vm799, %v774, 0
      %v870 = vsel %vm799, %v775, 0
      %v873 = vsel %vm799, %v776, 0
      %v876 = vsel %vm799, %v777, 0
      %v879 = vsel %vm799, %v778, 0
      %v882 = vsel %vm799, %v779, 0
      %v885 = vsel %vm799, %v780, 0
      %v888 = vsel %vm799, %v781, 0
      %v891 = vsel %vm799, %v782, 0
      %v894 = vsel %vm799, %v783, 0
      %896 = vmatprep.subr.mxu0 0.0
      %897 = vmatpush1.msra.mxu0 %v784
      %898 = vmatprep.subr.mxu0 0.0
      %899 = vmatpush1.msra.mxu0 %v785
      %900 = vmatprep.subr.mxu0 0.0
      %901 = vmatpush1.msra.mxu0 %v786
      %902 = vmatprep.subr.mxu0 0.0
      %903 = vmatpush1.msra.mxu0 %v787
      %904 = vmatprep.subr.mxu0 0.0
      %905 = vmatpush1.msra.mxu0 %v788
      %906 = vmatprep.subr.mxu0 0.0
      %907 = vmatpush1.msra.mxu0 %v789
      %908 = vmatprep.subr.mxu0 0.0
      %909 = vmatpush1.msra.mxu0 %v790
      %910 = vmatprep.subr.mxu0 0.0
      %911 = vmatpush1.msra.mxu0 %v791
      %912 = vmatprep.subr.mxu0 0.0
      %913 = vmatpush1.msra.mxu0 0.0
      %914 = vmatprep.subr.mxu0 0.0
      %915 = vmatpush1.msra.mxu0 0.0
      %916 = vmatprep.subr.mxu0 0.0
      %917 = vmatpush1.msra.mxu0 0.0
      %918 = vmatprep.subr.mxu0 0.0
      %919 = vmatpush1.msra.mxu0 0.0
      %920 = vmatprep.subr.mxu0 0.0
      %921 = vmatpush1.msra.mxu0 0.0
      %922 = vmatprep.subr.mxu0 0.0
      %923 = vmatpush1.msra.mxu0 0.0
      %924 = vmatprep.subr.mxu0 0.0
      %925 = vmatpush1.msra.mxu0 0.0
      %926 = vmatprep.subr.mxu0 0.0
      %927 = vmatpush1.msra.mxu0 0.0
      %928 = vmatprep.subr.mxu0 0.0
      %929 = vmatpush1.msra.mxu0 0.0
      %930 = vmatprep.subr.mxu0 0.0
      %931 = vmatpush1.msra.mxu0 0.0
      %932 = vmatprep.subr.mxu0 0.0
      %933 = vmatpush1.msra.mxu0 0.0
      %934 = vmatprep.subr.mxu0 0.0
      %935 = vmatpush1.msra.mxu0 0.0
      %936 = vmatprep.subr.mxu0 0.0
      %937 = vmatpush1.msra.mxu0 0.0
      %938 = vmatprep.subr.mxu0 0.0
      %939 = vmatpush1.msra.mxu0 0.0
      %940 = vmatprep.subr.mxu0 0.0
      %941 = vmatpush1.msra.mxu0 0.0
      %942 = vmatprep.subr.mxu0 0.0
      %943 = vmatpush1.msra.mxu0 0.0
      %944 = vmatprep.subr.mxu0 0.0
      %945 = vmatpush1.msra.mxu0 0.0
      %946 = vmatprep.subr.mxu0 0.0
      %947 = vmatpush1.msra.mxu0 0.0
      %948 = vmatprep.subr.mxu0 0.0
      %949 = vmatpush1.msra.mxu0 0.0
      %950 = vmatprep.subr.mxu0 0.0
      %951 = vmatpush1.msra.mxu0 0.0
      %952 = vmatprep.subr.mxu0 0.0
      %953 = vmatpush1.msra.mxu0 0.0
      %954 = vmatprep.subr.mxu0 0.0
      %955 = vmatpush1.msra.mxu0 0.0
      %956 = vmatprep.subr.mxu0 0.0
      %957 = vmatpush1.msra.mxu0 0.0
      %958 = vmatprep.subr.mxu0 0.0
      %959 = vmatpush1.msra.mxu0 0.0
      %960 = vmatprep.mubr.f32.mxu0 0.0
      %961 = vmatmul.mubr.f32.gmra.mrb[0].mxu0 %v801
      %v962 = vpop.f32.mrb[0].mxu0
      %v963 = vadd.f32 %v797, %v962
      %v964 = vpop.f32.mrb[0].mxu0
      %965 = vmatprep.mubr.f32.mxu0 0.0
      %966 = vmatmul.mubr.f32.gmra.mrb[0].mxu0 %v804
      %v967 = vpop.f32.mrb[0].mxu0
      %v968 = vadd.f32 %v797, %v967
      %v969 = vpop.f32.mrb[0].mxu0
      %970 = vmatprep.mubr.f32.mxu0 0.0
      %971 = vmatmul.mubr.f32.gmra.mrb[0].mxu0 %v807
      %v972 = vpop.f32.mrb[0].mxu0
      %v973 = vadd.f32 %v797, %v972
      %v974 = vpop.f32.mrb[0].mxu0
      %975 = vmatprep.mubr.f32.mxu0 0.0
      %976 = vmatmul.mubr.f32.gmra.mrb[0].mxu0 %v810
      %v977 = vpop.f32.mrb[0].mxu0
      %v978 = vadd.f32 %v797, %v977
      %v979 = vpop.f32.mrb[0].mxu0
      %980 = vmatprep.mubr.f32.mxu0 0.0
      %981 = vmatmul.mubr.f32.gmra.mrb[0].mxu0 %v813
      %v982 = vpop.f32.mrb[0].mxu0
      %v983 = vadd.f32 %v797, %v982
      %v984 = vpop.f32.mrb[0].mxu0
      %985 = vmatprep.mubr.f32.mxu0 0.0
      %986 = vmatmul.mubr.f32.gmra.mrb[0].mxu0 %v816
      %v987 = vpop.f32.mrb[0].mxu0
      %v988 = vadd.f32 %v797, %v987
      %v989 = vpop.f32.mrb[0].mxu0
      %990 = vmatprep.mubr.f32.mxu0 0.0
      %991 = vmatmul.mubr.f32.gmra.mrb[0].mxu0 %v819
      %v992 = vpop.f32.mrb[0].mxu0
      %v993 = vadd.f32 %v797, %v992
      %v994 = vpop.f32.mrb[0].mxu0
      %995 = vmatprep.mubr.f32.mxu0 0.0
      %996 = vmatmul.mubr.f32.gmra.mrb[0].mxu0 %v822
      %v997 = vpop.f32.mrb[0].mxu0
      %v998 = vadd.f32 %v797, %v997
      %v999 = vpop.f32.mrb[0].mxu0
      %1000 = vmatprep.mubr.f32.mxu0 0.0
      %1001 = vmatmul.mubr.f32.gmra.mrb[0].mxu0 %v825
      %v1002 = vpop.f32.mrb[0].mxu0
      %v1003 = vadd.f32 %v797, %v1002
      %v1004 = vpop.f32.mrb[0].mxu0
      %1005 = vmatprep.mubr.f32.mxu0 0.0
      %1006 = vmatmul.mubr.f32.gmra.mrb[0].mxu0 %v828
      %v1007 = vpop.f32.mrb[0].mxu0
      %v1008 = vadd.f32 %v797, %v1007
      %v1009 = vpop.f32.mrb[0].mxu0
      %1010 = vmatprep.mubr.f32.mxu0 0.0
      %1011 = vmatmul.mubr.f32.gmra.mrb[0].mxu0 %v831
      %v1012 = vpop.f32.mrb[0].mxu0
      %v1013 = vadd.f32 %v797, %v1012
      %v1014 = vpop.f32.mrb[0].mxu0
      %1015 = vmatprep.mubr.f32.mxu0 0.0
      %1016 = vmatmul.mubr.f32.gmra.mrb[0].mxu0 %v834
      %v1017 = vpop.f32.mrb[0].mxu0
      %v1018 = vadd.f32 %v797, %v1017
      %v1019 = vpop.f32.mrb[0].mxu0
      %1020 = vmatprep.mubr.f32.mxu0 0.0
      %1021 = vmatmul.mubr.f32.gmra.mrb[0].mxu0 %v837
      %v1022 = vpop.f32.mrb[0].mxu0
      %v1023 = vadd.f32 %v797, %v1022
      %v1024 = vpop.f32.mrb[0].mxu0
      %1025 = vmatprep.mubr.f32.mxu0 0.0
      %1026 = vmatmul.mubr.f32.gmra.mrb[0].mxu0 %v840
      %v1027 = vpop.f32.mrb[0].mxu0
      %v1028 = vadd.f32 %v797, %v1027
      %v1029 = vpop.f32.mrb[0].mxu0
      %1030 = vmatprep.mubr.f32.mxu0 0.0
      %1031 = vmatmul.mubr.f32.gmra.mrb[0].mxu0 %v843
      %v1032 = vpop.f32.mrb[0].mxu0
      %v1033 = vadd.f32 %v797, %v1032
      %v1034 = vpop.f32.mrb[0].mxu0
      %1035 = vmatprep.mubr.f32.mxu0 0.0
      %1036 = vmatmul.mubr.f32.gmra.mrb[0].mxu0 %v846
      %v1037 = vpop.f32.mrb[0].mxu0
      %v1038 = vadd.f32 %v797, %v1037
      %v1039 = vpop.f32.mrb[0].mxu0
      %1040 = vmatprep.mubr.f32.mxu0 0.0
      %1041 = vmatmul.mubr.f32.gmra.mrb[0].mxu0 %v849
      %v1042 = vpop.f32.mrb[0].mxu0
      %v1043 = vadd.f32 %v797, %v1042
      %v1044 = vpop.f32.mrb[0].mxu0
      %1045 = vmatprep.mubr.f32.mxu0 0.0
      %1046 = vmatmul.mubr.f32.gmra.mrb[0].mxu0 %v852
      %v1047 = vpop.f32.mrb[0].mxu0
      %v1048 = vadd.f32 %v797, %v1047
      %v1049 = vpop.f32.mrb[0].mxu0
      %1050 = vmatprep.mubr.f32.mxu0 0.0
      %1051 = vmatmul.mubr.f32.gmra.mrb[0].mxu0 %v855
      %v1052 = vpop.f32.mrb[0].mxu0
      %v1053 = vadd.f32 %v797, %v1052
      %v1054 = vpop.f32.mrb[0].mxu0
      %1055 = vmatprep.mubr.f32.mxu0 0.0
      %1056 = vmatmul.mubr.f32.gmra.mrb[0].mxu0 %v858
      %v1057 = vpop.f32.mrb[0].mxu0
      %v1058 = vadd.f32 %v797, %v1057
      %v1059 = vpop.f32.mrb[0].mxu0
      %1060 = vmatprep.mubr.f32.mxu0 0.0
      %1061 = vmatmul.mubr.f32.gmra.mrb[0].mxu0 %v861
      %v1062 = vpop.f32.mrb[0].mxu0
      %v1063 = vadd.f32 %v797, %v1062
      %v1064 = vpop.f32.mrb[0].mxu0
      %1065 = vmatprep.mubr.f32.mxu0 0.0
      %1066 = vmatmul.mubr.f32.gmra.mrb[0].mxu0 %v864
      %v1067 = vpop.f32.mrb[0].mxu0
      %v1068 = vadd.f32 %v797, %v1067
      %v1069 = vpop.f32.mrb[0].mxu0
      %1070 = vmatprep.mubr.f32.mxu0 0.0
      %1071 = vmatmul.mubr.f32.gmra.mrb[0].mxu0 %v867
      %v1072 = vpop.f32.mrb[0].mxu0
      %v1073 = vadd.f32 %v797, %v1072
      %v1074 = vpop.f32.mrb[0].mxu0
      %1075 = vmatprep.mubr.f32.mxu0 0.0
      %1076 = vmatmul.mubr.f32.gmra.mrb[0].mxu0 %v870
      %v1077 = vpop.f32.mrb[0].mxu0
      %v1078 = vadd.f32 %v797, %v1077
      %v1079 = vpop.f32.mrb[0].mxu0
      %1080 = vmatprep.mubr.f32.mxu0 0.0
      %1081 = vmatmul.mubr.f32.gmra.mrb[0].mxu0 %v873
      %v1082 = vpop.f32.mrb[0].mxu0
      %v1083 = vadd.f32 %v797, %v1082
      %v1084 = vpop.f32.mrb[0].mxu0
      %1085 = vmatprep.mubr.f32.mxu0 0.0
      %1086 = vmatmul.mubr.f32.gmra.mrb[0].mxu0 %v876
      %v1087 = vpop.f32.mrb[0].mxu0
      %v1088 = vadd.f32 %v797, %v1087
      %v1089 = vpop.f32.mrb[0].mxu0
      %1090 = vmatprep.mubr.f32.mxu0 0.0
      %1091 = vmatmul.mubr.f32.gmra.mrb[0].mxu0 %v879
      %v1092 = vpop.f32.mrb[0].mxu0
      %v1093 = vadd.f32 %v797, %v1092
      %v1094 = vpop.f32.mrb[0].mxu0
      %1095 = vmatprep.mubr.f32.mxu0 0.0
      %1096 = vmatmul.mubr.f32.gmra.mrb[0].mxu0 %v882
      %v1097 = vpop.f32.mrb[0].mxu0
      %v1098 = vadd.f32 %v797, %v1097
      %v1099 = vpop.f32.mrb[0].mxu0
      %1100 = vmatprep.mubr.f32.mxu0 0.0
      %1101 = vmatmul.mubr.f32.gmra.mrb[0].mxu0 %v885
      %v1102 = vpop.f32.mrb[0].mxu0
      %v1103 = vadd.f32 %v797, %v1102
      %v1104 = vpop.f32.mrb[0].mxu0
      %1105 = vmatprep.mubr.f32.mxu0 0.0
      %1106 = vmatmul.mubr.f32.gmra.mrb[0].mxu0 %v888
      %v1107 = vpop.f32.mrb[0].mxu0
      %v1108 = vadd.f32 %v797, %v1107
      %v1109 = vpop.f32.mrb[0].mxu0
      %1110 = vmatprep.mubr.f32.mxu0 0.0
      %1111 = vmatmul.mubr.f32.gmra.mrb[0].mxu0 %v891
      %v1112 = vpop.f32.mrb[0].mxu0
      %v1113 = vadd.f32 %v797, %v1112
      %v1114 = vpop.f32.mrb[0].mxu0
      %1115 = vmatprep.mubr.f32.mxu0 0.0
      %1116 = vmatmul.mubr.f32.gmra.mrb[0].mxu0 %v894
      %v1117 = vpop.f32.mrb[0].mxu0
      %v1118 = vadd.f32 %v797, %v1117
      %v1119 = vpop.f32.mrb[0].mxu0
      %1120 = vdwg.mxu0
      %v1121 = vmax.f32 %v963, 0.0
      %v1122 = vmax.f32 %v968, 0.0
      %v1123 = vmax.f32 %v973, 0.0
      %v1124 = vmax.f32 %v978, 0.0
      %v1125 = vmax.f32 %v983, 0.0
      %v1126 = vmax.f32 %v988, 0.0
      %v1127 = vmax.f32 %v993, 0.0
      %v1128 = vmax.f32 %v998, 0.0
      %v1129 = vmax.f32 %v1003, 0.0
      %v1130 = vmax.f32 %v1008, 0.0
      %v1131 = vmax.f32 %v1013, 0.0
      %v1132 = vmax.f32 %v1018, 0.0
      %v1133 = vmax.f32 %v1023, 0.0
      %v1134 = vmax.f32 %v1028, 0.0
      %v1135 = vmax.f32 %v1033, 0.0
      %v1136 = vmax.f32 %v1038, 0.0
      %v1137 = vmax.f32 %v1043, 0.0
      %v1138 = vmax.f32 %v1048, 0.0
      %v1139 = vmax.f32 %v1053, 0.0
      %v1140 = vmax.f32 %v1058, 0.0
      %v1141 = vmax.f32 %v1063, 0.0
      %v1142 = vmax.f32 %v1068, 0.0
      %v1143 = vmax.f32 %v1073, 0.0
      %v1144 = vmax.f32 %v1078, 0.0
      %v1145 = vmax.f32 %v1083, 0.0
      %v1146 = vmax.f32 %v1088, 0.0
      %v1147 = vmax.f32 %v1093, 0.0
      %v1148 = vmax.f32 %v1098, 0.0
      %v1149 = vmax.f32 %v1103, 0.0
      %v1150 = vmax.f32 %v1108, 0.0
      %v1151 = vmax.f32 %v1113, 0.0
      %v1152 = vmax.f32 %v1118, 0.0
      %v1153 = vadd.f32 %v1121, %v752
      %v1154 = vadd.f32 %v1122, %v753
      %v1155 = vadd.f32 %v1123, %v754
      %v1156 = vadd.f32 %v1124, %v755
      %v1157 = vadd.f32 %v1125, %v756
      %v1158 = vadd.f32 %v1126, %v757
      %v1159 = vadd.f32 %v1127, %v758
      %v1160 = vadd.f32 %v1128, %v759
      %v1161 = vadd.f32 %v1129, %v760
      %v1162 = vadd.f32 %v1130, %v761
      %v1163 = vadd.f32 %v1131, %v762
      %v1164 = vadd.f32 %v1132, %v763
      %v1165 = vadd.f32 %v1133, %v764
      %v1166 = vadd.f32 %v1134, %v765
      %v1167 = vadd.f32 %v1135, %v766
      %v1168 = vadd.f32 %v1136, %v767
      %v1169 = vadd.f32 %v1137, %v768
      %v1170 = vadd.f32 %v1138, %v769
      %v1171 = vadd.f32 %v1139, %v770
      %v1172 = vadd.f32 %v1140, %v771
      %v1173 = vadd.f32 %v1141, %v772
      %v1174 = vadd.f32 %v1142, %v773
      %v1175 = vadd.f32 %v1143, %v774
      %v1176 = vadd.f32 %v1144, %v775
      %v1177 = vadd.f32 %v1145, %v776
      %v1178 = vadd.f32 %v1146, %v777
      %v1179 = vadd.f32 %v1147, %v778
      %v1180 = vadd.f32 %v1148, %v779
      %v1181 = vadd.f32 %v1149, %v780
      %v1182 = vadd.f32 %v1150, %v781
      %v1183 = vadd.f32 %v1151, %v782
      %v1184 = vadd.f32 %v1152, %v783
      %v1185 = vmul.f32 %v1153, 0.5
      %v1186 = vmul.f32 %v1154, 0.5
      %v1187 = vmul.f32 %v1155, 0.5
      %v1188 = vmul.f32 %v1156, 0.5
      %v1189 = vmul.f32 %v1157, 0.5
      %v1190 = vmul.f32 %v1158, 0.5
      %v1191 = vmul.f32 %v1159, 0.5
      %v1192 = vmul.f32 %v1160, 0.5
      %v1193 = vmul.f32 %v1161, 0.5
      %v1194 = vmul.f32 %v1162, 0.5
      %v1195 = vmul.f32 %v1163, 0.5
      %v1196 = vmul.f32 %v1164, 0.5
      %v1197 = vmul.f32 %v1165, 0.5
      %v1198 = vmul.f32 %v1166, 0.5
      %v1199 = vmul.f32 %v1167, 0.5
      %v1200 = vmul.f32 %v1168, 0.5
      %v1201 = vmul.f32 %v1169, 0.5
      %v1202 = vmul.f32 %v1170, 0.5
      %v1203 = vmul.f32 %v1171, 0.5
      %v1204 = vmul.f32 %v1172, 0.5
      %v1205 = vmul.f32 %v1173, 0.5
      %v1206 = vmul.f32 %v1174, 0.5
      %v1207 = vmul.f32 %v1175, 0.5
      %v1208 = vmul.f32 %v1176, 0.5
      %v1209 = vmul.f32 %v1177, 0.5
      %v1210 = vmul.f32 %v1178, 0.5
      %v1211 = vmul.f32 %v1179, 0.5
      %v1212 = vmul.f32 %v1180, 0.5
      %v1213 = vmul.f32 %v1181, 0.5
      %v1214 = vmul.f32 %v1182, 0.5
      %v1215 = vmul.f32 %v1183, 0.5
      %v1216 = vmul.f32 %v1184, 0.5
      %v1217 = vld [vmem:[%s5] sm:$0xff]
      %v1218 = vld [vmem:[%s5 + $0x8] sm:$0xff]
      %v1219 = vld [vmem:[%s5 + $0x10] sm:$0xff]
      %v1220 = vld [vmem:[%s5 + $0x18] sm:$0xff]
      %v1221 = vld [vmem:[%s5 + $0x20] sm:$0xff]
      %v1222 = vld [vmem:[%s5 + $0x28] sm:$0xff]
      %v1223 = vld [vmem:[%s5 + $0x30] sm:$0xff]
      %v1224 = vld [vmem:[%s5 + $0x38] sm:$0xff]
      %v1225 = vld [vmem:[%s6] sm:$0x1]
      %v1227 = vlaneseq
      %v1228 = vshrl.u32 %v1227, 7
      %v1229 = vsub.s32 0, %v1228
      %v1230 = vrot.slane %v1225, %v1229
      %v1233 = vsel %vm799, %v1185, 0
      %v1236 = vsel %vm799, %v1186, 0
      %v1239 = vsel %vm799, %v1187, 0
      %v1242 = vsel %vm799, %v1188, 0
      %v1245 = vsel %vm799, %v1189, 0
      %v1248 = vsel %vm799, %v1190, 0
      %v1251 = vsel %vm799, %v1191, 0
      %v1254 = vsel %vm799, %v1192, 0
      %v1257 = vsel %vm799, %v1193, 0
      %v1260 = vsel %vm799, %v1194, 0
      %v1263 = vsel %vm799, %v1195, 0
      %v1266 = vsel %vm799, %v1196, 0
      %v1269 = vsel %vm799, %v1197, 0
      %v1272 = vsel %vm799, %v1198, 0
      %v1275 = vsel %vm799, %v1199, 0
      %v1278 = vsel %vm799, %v1200, 0
      %v1281 = vsel %vm799, %v1201, 0
      %v1284 = vsel %vm799, %v1202, 0
      %v1287 = vsel %vm799, %v1203, 0
      %v1290 = vsel %vm799, %v1204, 0
      %v1293 = vsel %vm799, %v1205, 0
      %v1296 = vsel %vm799, %v1206, 0
      %v1299 = vsel %vm799, %v1207, 0
      %v1302 = vsel %vm799, %v1208, 0
      %v1305 = vsel %vm799, %v1209, 0
      %v1308 = vsel %vm799, %v1210, 0
      %v1311 = vsel %vm799, %v1211, 0
      %v1314 = vsel %vm799, %v1212, 0
      %v1317 = vsel %vm799, %v1213, 0
      %v1320 = vsel %vm799, %v1214, 0
      %v1323 = vsel %vm799, %v1215, 0
      %v1326 = vsel %vm799, %v1216, 0
      %1328 = vmatprep.subr.mxu0 0.0
      %1329 = vmatpush1.msra.mxu0 %v1217
      %1330 = vmatprep.subr.mxu0 0.0
      %1331 = vmatpush1.msra.mxu0 %v1218
      %1332 = vmatprep.subr.mxu0 0.0
      %1333 = vmatpush1.msra.mxu0 %v1219
      %1334 = vmatprep.subr.mxu0 0.0
      %1335 = vmatpush1.msra.mxu0 %v1220
      %1336 = vmatprep.subr.mxu0 0.0
      %1337 = vmatpush1.msra.mxu0 %v1221
      %1338 = vmatprep.subr.mxu0 0.0
      %1339 = vmatpush1.msra.mxu0 %v1222
      %1340 = vmatprep.subr.mxu0 0.0
      %1341 = vmatpush1.msra.mxu0 %v1223
      %1342 = vmatprep.subr.mxu0 0.0
      %1343 = vmatpush1.msra.mxu0 %v1224
      %1344 = vmatprep.subr.mxu0 0.0
      %1345 = vmatpush1.msra.mxu0 0.0
      %1346 = vmatprep.subr.mxu0 0.0
      %1347 = vmatpush1.msra.mxu0 0.0
      %1348 = vmatprep.subr.mxu0 0.0
      %1349 = vmatpush1.msra.mxu0 0.0
      %1350 = vmatprep.subr.mxu0 0.0
      %1351 = vmatpush1.msra.mxu0 0.0
      %1352 = vmatprep.subr.mxu0 0.0
      %1353 = vmatpush1.msra.mxu0 0.0
      %1354 = vmatprep.subr.mxu0 0.0
      %1355 = vmatpush1.msra.mxu0 0.0
      %1356 = vmatprep.subr.mxu0 0.0
      %1357 = vmatpush1.msra.mxu0 0.0
      %1358 = vmatprep.subr.mxu0 0.0
      %1359 = vmatpush1.msra.mxu0 0.0
      %1360 = vmatprep.subr.mxu0 0.0
      %1361 = vmatpush1.msra.mxu0 0.0
      %1362 = vmatprep.subr.mxu0 0.0
      %1363 = vmatpush1.msra.mxu0 0.0
      %1364 = vmatprep.subr.mxu0 0.0
      %1365 = vmatpush1.msra.mxu0 0.0
      %1366 = vmatprep.subr.mxu0 0.0
      %1367 = vmatpush1.msra.mxu0 0.0
      %1368 = vmatprep.subr.mxu0 0.0
      %1369 = vmatpush1.msra.mxu0 0.0
      %1370 = vmatprep.subr.mxu0 0.0
      %1371 = vmatpush1.msra.mxu0 0.0
      %1372 = vmatprep.subr.mxu0 0.0
      %1373 = vmatpush1.msra.mxu0 0.0
      %1374 = vmatprep.subr.mxu0 0.0
      %1375 = vmatpush1.msra.mxu0 0.0
      %1376 = vmatprep.subr.mxu0 0.0
      %1377 = vmatpush1.msra.mxu0 0.0
      %1378 = vmatprep.subr.mxu0 0.0
      %1379 = vmatpush1.msra.mxu0 0.0
      %1380 = vmatprep.subr.mxu0 0.0
      %1381 = vmatpush1.msra.mxu0 0.0
      %1382 = vmatprep.subr.mxu0 0.0
      %1383 = vmatpush1.msra.mxu0 0.0
      %1384 = vmatprep.subr.mxu0 0.0
      %1385 = vmatpush1.msra.mxu0 0.0
      %1386 = vmatprep.subr.mxu0 0.0
      %1387 = vmatpush1.msra.mxu0 0.0
      %1388 = vmatprep.subr.mxu0 0.0
      %1389 = vmatpush1.msra.mxu0 0.0
      %1390 = vmatprep.subr.mxu0 0.0
      %1391 = vmatpush1.msra.mxu0 0.0
      %1392 = vmatprep.mubr.f32.mxu0 0.0
      %1393 = vmatmul.mubr.f32.gmra.mrb[0].mxu0 %v1233
      %v1394 = vpop.f32.mrb[0].mxu0
      %v1395 = vadd.f32 %v1230, %v1394
      %v1396 = vpop.f32.mrb[0].mxu0
      %1397 = vmatprep.mubr.f32.mxu0 0.0
      %1398 = vmatmul.mubr.f32.gmra.mrb[0].mxu0 %v1236
      %v1399 = vpop.f32.mrb[0].mxu0
      %v1400 = vadd.f32 %v1230, %v1399
      %v1401 = vpop.f32.mrb[0].mxu0
      %1402 = vmatprep.mubr.f32.mxu0 0.0
      %1403 = vmatmul.mubr.f32.gmra.mrb[0].mxu0 %v1239
      %v1404 = vpop.f32.mrb[0].mxu0
      %v1405 = vadd.f32 %v1230, %v1404
      %v1406 = vpop.f32.mrb[0].mxu0
      %1407 = vmatprep.mubr.f32.mxu0 0.0
      %1408 = vmatmul.mubr.f32.gmra.mrb[0].mxu0 %v1242
      %v1409 = vpop.f32.mrb[0].mxu0
      %v1410 = vadd.f32 %v1230, %v1409
      %v1411 = vpop.f32.mrb[0].mxu0
      %1412 = vmatprep.mubr.f32.mxu0 0.0
      %1413 = vmatmul.mubr.f32.gmra.mrb[0].mxu0 %v1245
      %v1414 = vpop.f32.mrb[0].mxu0
      %v1415 = vadd.f32 %v1230, %v1414
      %v1416 = vpop.f32.mrb[0].mxu0
      %1417 = vmatprep.mubr.f32.mxu0 0.0
      %1418 = vmatmul.mubr.f32.gmra.mrb[0].mxu0 %v1248
      %v1419 = vpop.f32.mrb[0].mxu0
      %v1420 = vadd.f32 %v1230, %v1419
      %v1421 = vpop.f32.mrb[0].mxu0
      %1422 = vmatprep.mubr.f32.mxu0 0.0
      %1423 = vmatmul.mubr.f32.gmra.mrb[0].mxu0 %v1251
      %v1424 = vpop.f32.mrb[0].mxu0
      %v1425 = vadd.f32 %v1230, %v1424
      %v1426 = vpop.f32.mrb[0].mxu0
      %1427 = vmatprep.mubr.f32.mxu0 0.0
      %1428 = vmatmul.mubr.f32.gmra.mrb[0].mxu0 %v1254
      %v1429 = vpop.f32.mrb[0].mxu0
      %v1430 = vadd.f32 %v1230, %v1429
      %v1431 = vpop.f32.mrb[0].mxu0
      %1432 = vmatprep.mubr.f32.mxu0 0.0
      %1433 = vmatmul.mubr.f32.gmra.mrb[0].mxu0 %v1257
      %v1434 = vpop.f32.mrb[0].mxu0
      %v1435 = vadd.f32 %v1230, %v1434
      %v1436 = vpop.f32.mrb[0].mxu0
      %1437 = vmatprep.mubr.f32.mxu0 0.0
      %1438 = vmatmul.mubr.f32.gmra.mrb[0].mxu0 %v1260
      %v1439 = vpop.f32.mrb[0].mxu0
      %v1440 = vadd.f32 %v1230, %v1439
      %v1441 = vpop.f32.mrb[0].mxu0
      %1442 = vmatprep.mubr.f32.mxu0 0.0
      %1443 = vmatmul.mubr.f32.gmra.mrb[0].mxu0 %v1263
      %v1444 = vpop.f32.mrb[0].mxu0
      %v1445 = vadd.f32 %v1230, %v1444
      %v1446 = vpop.f32.mrb[0].mxu0
      %1447 = vmatprep.mubr.f32.mxu0 0.0
      %1448 = vmatmul.mubr.f32.gmra.mrb[0].mxu0 %v1266
      %v1449 = vpop.f32.mrb[0].mxu0
      %v1450 = vadd.f32 %v1230, %v1449
      %v1451 = vpop.f32.mrb[0].mxu0
      %1452 = vmatprep.mubr.f32.mxu0 0.0
      %1453 = vmatmul.mubr.f32.gmra.mrb[0].mxu0 %v1269
      %v1454 = vpop.f32.mrb[0].mxu0
      %v1455 = vadd.f32 %v1230, %v1454
      %v1456 = vpop.f32.mrb[0].mxu0
      %1457 = vmatprep.mubr.f32.mxu0 0.0
      %1458 = vmatmul.mubr.f32.gmra.mrb[0].mxu0 %v1272
      %v1459 = vpop.f32.mrb[0].mxu0
      %v1460 = vadd.f32 %v1230, %v1459
      %v1461 = vpop.f32.mrb[0].mxu0
      %1462 = vmatprep.mubr.f32.mxu0 0.0
      %1463 = vmatmul.mubr.f32.gmra.mrb[0].mxu0 %v1275
      %v1464 = vpop.f32.mrb[0].mxu0
      %v1465 = vadd.f32 %v1230, %v1464
      %v1466 = vpop.f32.mrb[0].mxu0
      %1467 = vmatprep.mubr.f32.mxu0 0.0
      %1468 = vmatmul.mubr.f32.gmra.mrb[0].mxu0 %v1278
      %v1469 = vpop.f32.mrb[0].mxu0
      %v1470 = vadd.f32 %v1230, %v1469
      %v1471 = vpop.f32.mrb[0].mxu0
      %1472 = vmatprep.mubr.f32.mxu0 0.0
      %1473 = vmatmul.mubr.f32.gmra.mrb[0].mxu0 %v1281
      %v1474 = vpop.f32.mrb[0].mxu0
      %v1475 = vadd.f32 %v1230, %v1474
      %v1476 = vpop.f32.mrb[0].mxu0
      %1477 = vmatprep.mubr.f32.mxu0 0.0
      %1478 = vmatmul.mubr.f32.gmra.mrb[0].mxu0 %v1284
      %v1479 = vpop.f32.mrb[0].mxu0
      %v1480 = vadd.f32 %v1230, %v1479
      %v1481 = vpop.f32.mrb[0].mxu0
      %1482 = vmatprep.mubr.f32.mxu0 0.0
      %1483 = vmatmul.mubr.f32.gmra.mrb[0].mxu0 %v1287
      %v1484 = vpop.f32.mrb[0].mxu0
      %v1485 = vadd.f32 %v1230, %v1484
      %v1486 = vpop.f32.mrb[0].mxu0
      %1487 = vmatprep.mubr.f32.mxu0 0.0
      %1488 = vmatmul.mubr.f32.gmra.mrb[0].mxu0 %v1290
      %v1489 = vpop.f32.mrb[0].mxu0
      %v1490 = vadd.f32 %v1230, %v1489
      %v1491 = vpop.f32.mrb[0].mxu0
      %1492 = vmatprep.mubr.f32.mxu0 0.0
      %1493 = vmatmul.mubr.f32.gmra.mrb[0].mxu0 %v1293
      %v1494 = vpop.f32.mrb[0].mxu0
      %v1495 = vadd.f32 %v1230, %v1494
      %v1496 = vpop.f32.mrb[0].mxu0
      %1497 = vmatprep.mubr.f32.mxu0 0.0
      %1498 = vmatmul.mubr.f32.gmra.mrb[0].mxu0 %v1296
      %v1499 = vpop.f32.mrb[0].mxu0
      %v1500 = vadd.f32 %v1230, %v1499
      %v1501 = vpop.f32.mrb[0].mxu0
      %1502 = vmatprep.mubr.f32.mxu0 0.0
      %1503 = vmatmul.mubr.f32.gmra.mrb[0].mxu0 %v1299
      %v1504 = vpop.f32.mrb[0].mxu0
      %v1505 = vadd.f32 %v1230, %v1504
      %v1506 = vpop.f32.mrb[0].mxu0
      %1507 = vmatprep.mubr.f32.mxu0 0.0
      %1508 = vmatmul.mubr.f32.gmra.mrb[0].mxu0 %v1302
      %v1509 = vpop.f32.mrb[0].mxu0
      %v1510 = vadd.f32 %v1230, %v1509
      %v1511 = vpop.f32.mrb[0].mxu0
      %1512 = vmatprep.mubr.f32.mxu0 0.0
      %1513 = vmatmul.mubr.f32.gmra.mrb[0].mxu0 %v1305
      %v1514 = vpop.f32.mrb[0].mxu0
      %v1515 = vadd.f32 %v1230, %v1514
      %v1516 = vpop.f32.mrb[0].mxu0
      %1517 = vmatprep.mubr.f32.mxu0 0.0
      %1518 = vmatmul.mubr.f32.gmra.mrb[0].mxu0 %v1308
      %v1519 = vpop.f32.mrb[0].mxu0
      %v1520 = vadd.f32 %v1230, %v1519
      %v1521 = vpop.f32.mrb[0].mxu0
      %1522 = vmatprep.mubr.f32.mxu0 0.0
      %1523 = vmatmul.mubr.f32.gmra.mrb[0].mxu0 %v1311
      %v1524 = vpop.f32.mrb[0].mxu0
      %v1525 = vadd.f32 %v1230, %v1524
      %v1526 = vpop.f32.mrb[0].mxu0
      %1527 = vmatprep.mubr.f32.mxu0 0.0
      %1528 = vmatmul.mubr.f32.gmra.mrb[0].mxu0 %v1314
      %v1529 = vpop.f32.mrb[0].mxu0
      %v1530 = vadd.f32 %v1230, %v1529
      %v1531 = vpop.f32.mrb[0].mxu0
      %1532 = vmatprep.mubr.f32.mxu0 0.0
      %1533 = vmatmul.mubr.f32.gmra.mrb[0].mxu0 %v1317
      %v1534 = vpop.f32.mrb[0].mxu0
      %v1535 = vadd.f32 %v1230, %v1534
      %v1536 = vpop.f32.mrb[0].mxu0
      %1537 = vmatprep.mubr.f32.mxu0 0.0
      %1538 = vmatmul.mubr.f32.gmra.mrb[0].mxu0 %v1320
      %v1539 = vpop.f32.mrb[0].mxu0
      %v1540 = vadd.f32 %v1230, %v1539
      %v1541 = vpop.f32.mrb[0].mxu0
      %1542 = vmatprep.mubr.f32.mxu0 0.0
      %1543 = vmatmul.mubr.f32.gmra.mrb[0].mxu0 %v1323
      %v1544 = vpop.f32.mrb[0].mxu0
      %v1545 = vadd.f32 %v1230, %v1544
      %v1546 = vpop.f32.mrb[0].mxu0
      %1547 = vmatprep.mubr.f32.mxu0 0.0
      %1548 = vmatmul.mubr.f32.gmra.mrb[0].mxu0 %v1326
      %v1549 = vpop.f32.mrb[0].mxu0
      %v1550 = vadd.f32 %v1230, %v1549
      %v1551 = vpop.f32.mrb[0].mxu0
      %1552 = vdwg.mxu0
      %v1553 = vmax.f32 %v1395, 0.0
      %v1554 = vmax.f32 %v1400, 0.0
      %v1555 = vmax.f32 %v1405, 0.0
      %v1556 = vmax.f32 %v1410, 0.0
      %v1557 = vmax.f32 %v1415, 0.0
      %v1558 = vmax.f32 %v1420, 0.0
      %v1559 = vmax.f32 %v1425, 0.0
      %v1560 = vmax.f32 %v1430, 0.0
      %v1561 = vmax.f32 %v1435, 0.0
      %v1562 = vmax.f32 %v1440, 0.0
      %v1563 = vmax.f32 %v1445, 0.0
      %v1564 = vmax.f32 %v1450, 0.0
      %v1565 = vmax.f32 %v1455, 0.0
      %v1566 = vmax.f32 %v1460, 0.0
      %v1567 = vmax.f32 %v1465, 0.0
      %v1568 = vmax.f32 %v1470, 0.0
      %v1569 = vmax.f32 %v1475, 0.0
      %v1570 = vmax.f32 %v1480, 0.0
      %v1571 = vmax.f32 %v1485, 0.0
      %v1572 = vmax.f32 %v1490, 0.0
      %v1573 = vmax.f32 %v1495, 0.0
      %v1574 = vmax.f32 %v1500, 0.0
      %v1575 = vmax.f32 %v1505, 0.0
      %v1576 = vmax.f32 %v1510, 0.0
      %v1577 = vmax.f32 %v1515, 0.0
      %v1578 = vmax.f32 %v1520, 0.0
      %v1579 = vmax.f32 %v1525, 0.0
      %v1580 = vmax.f32 %v1530, 0.0
      %v1581 = vmax.f32 %v1535, 0.0
      %v1582 = vmax.f32 %v1540, 0.0
      %v1583 = vmax.f32 %v1545, 0.0
      %v1584 = vmax.f32 %v1550, 0.0
      %v1585 = vadd.f32 %v1553, %v1185
      %v1586 = vadd.f32 %v1554, %v1186
      %v1587 = vadd.f32 %v1555, %v1187
      %v1588 = vadd.f32 %v1556, %v1188
      %v1589 = vadd.f32 %v1557, %v1189
      %v1590 = vadd.f32 %v1558, %v1190
      %v1591 = vadd.f32 %v1559, %v1191
      %v1592 = vadd.f32 %v1560, %v1192
      %v1593 = vadd.f32 %v1561, %v1193
      %v1594 = vadd.f32 %v1562, %v1194
      %v1595 = vadd.f32 %v1563, %v1195
      %v1596 = vadd.f32 %v1564, %v1196
      %v1597 = vadd.f32 %v1565, %v1197
      %v1598 = vadd.f32 %v1566, %v1198
      %v1599 = vadd.f32 %v1567, %v1199
      %v1600 = vadd.f32 %v1568, %v1200
      %v1601 = vadd.f32 %v1569, %v1201
      %v1602 = vadd.f32 %v1570, %v1202
      %v1603 = vadd.f32 %v1571, %v1203
      %v1604 = vadd.f32 %v1572, %v1204
      %v1605 = vadd.f32 %v1573, %v1205
      %v1606 = vadd.f32 %v1574, %v1206
      %v1607 = vadd.f32 %v1575, %v1207
      %v1608 = vadd.f32 %v1576, %v1208
      %v1609 = vadd.f32 %v1577, %v1209
      %v1610 = vadd.f32 %v1578, %v1210
      %v1611 = vadd.f32 %v1579, %v1211
      %v1612 = vadd.f32 %v1580, %v1212
      %v1613 = vadd.f32 %v1581, %v1213
      %v1614 = vadd.f32 %v1582, %v1214
      %v1615 = vadd.f32 %v1583, %v1215
      %v1616 = vadd.f32 %v1584, %v1216
      %v1617 = vmul.f32 %v1585, 0.5
      %v1618 = vmul.f32 %v1586, 0.5
      %v1619 = vmul.f32 %v1587, 0.5
      %v1620 = vmul.f32 %v1588, 0.5
      %v1621 = vmul.f32 %v1589, 0.5
      %v1622 = vmul.f32 %v1590, 0.5
      %v1623 = vmul.f32 %v1591, 0.5
      %v1624 = vmul.f32 %v1592, 0.5
      %v1625 = vmul.f32 %v1593, 0.5
      %v1626 = vmul.f32 %v1594, 0.5
      %v1627 = vmul.f32 %v1595, 0.5
      %v1628 = vmul.f32 %v1596, 0.5
      %v1629 = vmul.f32 %v1597, 0.5
      %v1630 = vmul.f32 %v1598, 0.5
      %v1631 = vmul.f32 %v1599, 0.5
      %v1632 = vmul.f32 %v1600, 0.5
      %v1633 = vmul.f32 %v1601, 0.5
      %v1634 = vmul.f32 %v1602, 0.5
      %v1635 = vmul.f32 %v1603, 0.5
      %v1636 = vmul.f32 %v1604, 0.5
      %v1637 = vmul.f32 %v1605, 0.5
      %v1638 = vmul.f32 %v1606, 0.5
      %v1639 = vmul.f32 %v1607, 0.5
      %v1640 = vmul.f32 %v1608, 0.5
      %v1641 = vmul.f32 %v1609, 0.5
      %v1642 = vmul.f32 %v1610, 0.5
      %v1643 = vmul.f32 %v1611, 0.5
      %v1644 = vmul.f32 %v1612, 0.5
      %v1645 = vmul.f32 %v1613, 0.5
      %v1646 = vmul.f32 %v1614, 0.5
      %v1647 = vmul.f32 %v1615, 0.5
      %v1648 = vmul.f32 %v1616, 0.5
      %v1649 = vld [vmem:[%s7] sm:$0xff]
      %v1650 = vld [vmem:[%s7 + $0x8] sm:$0xff]
      %v1651 = vld [vmem:[%s7 + $0x10] sm:$0xff]
      %v1652 = vld [vmem:[%s7 + $0x18] sm:$0xff]
      %v1653 = vld [vmem:[%s7 + $0x20] sm:$0xff]
      %v1654 = vld [vmem:[%s7 + $0x28] sm:$0xff]
      %v1655 = vld [vmem:[%s7 + $0x30] sm:$0xff]
      %v1656 = vld [vmem:[%s7 + $0x38] sm:$0xff]
      %v1657 = vld [vmem:[%s8] sm:$0x1]
      %v1659 = vlaneseq
      %v1660 = vshrl.u32 %v1659, 7
      %v1661 = vsub.s32 0, %v1660
      %v1662 = vrot.slane %v1657, %v1661
      %v1665 = vsel %vm799, %v1617, 0
      %v1668 = vsel %vm799, %v1618, 0
      %v1671 = vsel %vm799, %v1619, 0
      %v1674 = vsel %vm799, %v1620, 0
      %v1677 = vsel %vm799, %v1621, 0
      %v1680 = vsel %vm799, %v1622, 0
      %v1683 = vsel %vm799, %v1623, 0
      %v1686 = vsel %vm799, %v1624, 0
      %v1689 = vsel %vm799, %v1625, 0
      %v1692 = vsel %vm799, %v1626, 0
      %v1695 = vsel %vm799, %v1627, 0
      %v1698 = vsel %vm799, %v1628, 0
      %v1701 = vsel %vm799, %v1629, 0
      %v1704 = vsel %vm799, %v1630, 0
      %v1707 = vsel %vm799, %v1631, 0
      %v1710 = vsel %vm799, %v1632, 0
      %v1713 = vsel %vm799, %v1633, 0
      %v1716 = vsel %vm799, %v1634, 0
      %v1719 = vsel %vm799, %v1635, 0
      %v1722 = vsel %vm799, %v1636, 0
      %v1725 = vsel %vm799, %v1637, 0
      %v1728 = vsel %vm799, %v1638, 0
      %v1731 = vsel %vm799, %v1639, 0
      %v1734 = vsel %vm799, %v1640, 0
      %v1737 = vsel %vm799, %v1641, 0
      %v1740 = vsel %vm799, %v1642, 0
      %v1743 = vsel %vm799, %v1643, 0
      %v1746 = vsel %vm799, %v1644, 0
      %v1749 = vsel %vm799, %v1645, 0
      %v1752 = vsel %vm799, %v1646, 0
      %v1755 = vsel %vm799, %v1647, 0
      %v1758 = vsel %vm799, %v1648, 0
      %1760 = vmatprep.subr.mxu0 0.0
      %1761 = vmatpush1.msra.mxu0 %v1649
      %1762 = vmatprep.subr.mxu0 0.0
      %1763 = vmatpush1.msra.mxu0 %v1650
      %1764 = vmatprep.subr.mxu0 0.0
      %1765 = vmatpush1.msra.mxu0 %v1651
      %1766 = vmatprep.subr.mxu0 0.0
      %1767 = vmatpush1.msra.mxu0 %v1652
      %1768 = vmatprep.subr.mxu0 0.0
      %1769 = vmatpush1.msra.mxu0 %v1653
      %1770 = vmatprep.subr.mxu0 0.0
      %1771 = vmatpush1.msra.mxu0 %v1654
      %1772 = vmatprep.subr.mxu0 0.0
      %1773 = vmatpush1.msra.mxu0 %v1655
      %1774 = vmatprep.subr.mxu0 0.0
      %1775 = vmatpush1.msra.mxu0 %v1656
      %1776 = vmatprep.subr.mxu0 0.0
      %1777 = vmatpush1.msra.mxu0 0.0
      %1778 = vmatprep.subr.mxu0 0.0
      %1779 = vmatpush1.msra.mxu0 0.0
      %1780 = vmatprep.subr.mxu0 0.0
      %1781 = vmatpush1.msra.mxu0 0.0
      %1782 = vmatprep.subr.mxu0 0.0
      %1783 = vmatpush1.msra.mxu0 0.0
      %1784 = vmatprep.subr.mxu0 0.0
      %1785 = vmatpush1.msra.mxu0 0.0
      %1786 = vmatprep.subr.mxu0 0.0
      %1787 = vmatpush1.msra.mxu0 0.0
      %1788 = vmatprep.subr.mxu0 0.0
      %1789 = vmatpush1.msra.mxu0 0.0
      %1790 = vmatprep.subr.mxu0 0.0
      %1791 = vmatpush1.msra.mxu0 0.0
      %1792 = vmatprep.subr.mxu0 0.0
      %1793 = vmatpush1.msra.mxu0 0.0
      %1794 = vmatprep.subr.mxu0 0.0
      %1795 = vmatpush1.msra.mxu0 0.0
      %1796 = vmatprep.subr.mxu0 0.0
      %1797 = vmatpush1.msra.mxu0 0.0
      %1798 = vmatprep.subr.mxu0 0.0
      %1799 = vmatpush1.msra.mxu0 0.0
      %1800 = vmatprep.subr.mxu0 0.0
      %1801 = vmatpush1.msra.mxu0 0.0
      %1802 = vmatprep.subr.mxu0 0.0
      %1803 = vmatpush1.msra.mxu0 0.0
      %1804 = vmatprep.subr.mxu0 0.0
      %1805 = vmatpush1.msra.mxu0 0.0
      %1806 = vmatprep.subr.mxu0 0.0
      %1807 = vmatpush1.msra.mxu0 0.0
      %1808 = vmatprep.subr.mxu0 0.0
      %1809 = vmatpush1.msra.mxu0 0.0
      %1810 = vmatprep.subr.mxu0 0.0
      %1811 = vmatpush1.msra.mxu0 0.0
      %1812 = vmatprep.subr.mxu0 0.0
      %1813 = vmatpush1.msra.mxu0 0.0
      %1814 = vmatprep.subr.mxu0 0.0
      %1815 = vmatpush1.msra.mxu0 0.0
      %1816 = vmatprep.subr.mxu0 0.0
      %1817 = vmatpush1.msra.mxu0 0.0
      %1818 = vmatprep.subr.mxu0 0.0
      %1819 = vmatpush1.msra.mxu0 0.0
      %1820 = vmatprep.subr.mxu0 0.0
      %1821 = vmatpush1.msra.mxu0 0.0
      %1822 = vmatprep.subr.mxu0 0.0
      %1823 = vmatpush1.msra.mxu0 0.0
      %1824 = vmatprep.mubr.f32.mxu0 0.0
      %1825 = vmatmul.mubr.f32.gmra.mrb[0].mxu0 %v1665
      %v1826 = vpop.f32.mrb[0].mxu0
      %v1827 = vadd.f32 %v1662, %v1826
      %v1828 = vpop.f32.mrb[0].mxu0
      %1829 = vmatprep.mubr.f32.mxu0 0.0
      %1830 = vmatmul.mubr.f32.gmra.mrb[0].mxu0 %v1668
      %v1831 = vpop.f32.mrb[0].mxu0
      %v1832 = vadd.f32 %v1662, %v1831
      %v1833 = vpop.f32.mrb[0].mxu0
      %1834 = vmatprep.mubr.f32.mxu0 0.0
      %1835 = vmatmul.mubr.f32.gmra.mrb[0].mxu0 %v1671
      %v1836 = vpop.f32.mrb[0].mxu0
      %v1837 = vadd.f32 %v1662, %v1836
      %v1838 = vpop.f32.mrb[0].mxu0
      %1839 = vmatprep.mubr.f32.mxu0 0.0
      %1840 = vmatmul.mubr.f32.gmra.mrb[0].mxu0 %v1674
      %v1841 = vpop.f32.mrb[0].mxu0
      %v1842 = vadd.f32 %v1662, %v1841
      %v1843 = vpop.f32.mrb[0].mxu0
      %1844 = vmatprep.mubr.f32.mxu0 0.0
      %1845 = vmatmul.mubr.f32.gmra.mrb[0].mxu0 %v1677
      %v1846 = vpop.f32.mrb[0].mxu0
      %v1847 = vadd.f32 %v1662, %v1846
      %v1848 = vpop.f32.mrb[0].mxu0
      %1849 = vmatprep.mubr.f32.mxu0 0.0
      %1850 = vmatmul.mubr.f32.gmra.mrb[0].mxu0 %v1680
      %v1851 = vpop.f32.mrb[0].mxu0
      %v1852 = vadd.f32 %v1662, %v1851
      %v1853 = vpop.f32.mrb[0].mxu0
      %1854 = vmatprep.mubr.f32.mxu0 0.0
      %1855 = vmatmul.mubr.f32.gmra.mrb[0].mxu0 %v1683
      %v1856 = vpop.f32.mrb[0].mxu0
      %v1857 = vadd.f32 %v1662, %v1856
      %v1858 = vpop.f32.mrb[0].mxu0
      %1859 = vmatprep.mubr.f32.mxu0 0.0
      %1860 = vmatmul.mubr.f32.gmra.mrb[0].mxu0 %v1686
      %v1861 = vpop.f32.mrb[0].mxu0
      %v1862 = vadd.f32 %v1662, %v1861
      %v1863 = vpop.f32.mrb[0].mxu0
      %1864 = vmatprep.mubr.f32.mxu0 0.0
      %1865 = vmatmul.mubr.f32.gmra.mrb[0].mxu0 %v1689
      %v1866 = vpop.f32.mrb[0].mxu0
      %v1867 = vadd.f32 %v1662, %v1866
      %v1868 = vpop.f32.mrb[0].mxu0
      %1869 = vmatprep.mubr.f32.mxu0 0.0
      %1870 = vmatmul.mubr.f32.gmra.mrb[0].mxu0 %v1692
      %v1871 = vpop.f32.mrb[0].mxu0
      %v1872 = vadd.f32 %v1662, %v1871
      %v1873 = vpop.f32.mrb[0].mxu0
      %1874 = vmatprep.mubr.f32.mxu0 0.0
      %1875 = vmatmul.mubr.f32.gmra.mrb[0].mxu0 %v1695
      %v1876 = vpop.f32.mrb[0].mxu0
      %v1877 = vadd.f32 %v1662, %v1876
      %v1878 = vpop.f32.mrb[0].mxu0
      %1879 = vmatprep.mubr.f32.mxu0 0.0
      %1880 = vmatmul.mubr.f32.gmra.mrb[0].mxu0 %v1698
      %v1881 = vpop.f32.mrb[0].mxu0
      %v1882 = vadd.f32 %v1662, %v1881
      %v1883 = vpop.f32.mrb[0].mxu0
      %1884 = vmatprep.mubr.f32.mxu0 0.0
      %1885 = vmatmul.mubr.f32.gmra.mrb[0].mxu0 %v1701
      %v1886 = vpop.f32.mrb[0].mxu0
      %v1887 = vadd.f32 %v1662, %v1886
      %v1888 = vpop.f32.mrb[0].mxu0
      %1889 = vmatprep.mubr.f32.mxu0 0.0
      %1890 = vmatmul.mubr.f32.gmra.mrb[0].mxu0 %v1704
      %v1891 = vpop.f32.mrb[0].mxu0
      %v1892 = vadd.f32 %v1662, %v1891
      %v1893 = vpop.f32.mrb[0].mxu0
      %1894 = vmatprep.mubr.f32.mxu0 0.0
      %1895 = vmatmul.mubr.f32.gmra.mrb[0].mxu0 %v1707
      %v1896 = vpop.f32.mrb[0].mxu0
      %v1897 = vadd.f32 %v1662, %v1896
      %v1898 = vpop.f32.mrb[0].mxu0
      %1899 = vmatprep.mubr.f32.mxu0 0.0
      %1900 = vmatmul.mubr.f32.gmra.mrb[0].mxu0 %v1710
      %v1901 = vpop.f32.mrb[0].mxu0
      %v1902 = vadd.f32 %v1662, %v1901
      %v1903 = vpop.f32.mrb[0].mxu0
      %1904 = vmatprep.mubr.f32.mxu0 0.0
      %1905 = vmatmul.mubr.f32.gmra.mrb[0].mxu0 %v1713
      %v1906 = vpop.f32.mrb[0].mxu0
      %v1907 = vadd.f32 %v1662, %v1906
      %v1908 = vpop.f32.mrb[0].mxu0
      %1909 = vmatprep.mubr.f32.mxu0 0.0
      %1910 = vmatmul.mubr.f32.gmra.mrb[0].mxu0 %v1716
      %v1911 = vpop.f32.mrb[0].mxu0
      %v1912 = vadd.f32 %v1662, %v1911
      %v1913 = vpop.f32.mrb[0].mxu0
      %1914 = vmatprep.mubr.f32.mxu0 0.0
      %1915 = vmatmul.mubr.f32.gmra.mrb[0].mxu0 %v1719
      %v1916 = vpop.f32.mrb[0].mxu0
      %v1917 = vadd.f32 %v1662, %v1916
      %v1918 = vpop.f32.mrb[0].mxu0
      %1919 = vmatprep.mubr.f32.mxu0 0.0
      %1920 = vmatmul.mubr.f32.gmra.mrb[0].mxu0 %v1722
      %v1921 = vpop.f32.mrb[0].mxu0
      %v1922 = vadd.f32 %v1662, %v1921
      %v1923 = vpop.f32.mrb[0].mxu0
      %1924 = vmatprep.mubr.f32.mxu0 0.0
      %1925 = vmatmul.mubr.f32.gmra.mrb[0].mxu0 %v1725
      %v1926 = vpop.f32.mrb[0].mxu0
      %v1927 = vadd.f32 %v1662, %v1926
      %v1928 = vpop.f32.mrb[0].mxu0
      %1929 = vmatprep.mubr.f32.mxu0 0.0
      %1930 = vmatmul.mubr.f32.gmra.mrb[0].mxu0 %v1728
      %v1931 = vpop.f32.mrb[0].mxu0
      %v1932 = vadd.f32 %v1662, %v1931
      %v1933 = vpop.f32.mrb[0].mxu0
      %1934 = vmatprep.mubr.f32.mxu0 0.0
      %1935 = vmatmul.mubr.f32.gmra.mrb[0].mxu0 %v1731
      %v1936 = vpop.f32.mrb[0].mxu0
      %v1937 = vadd.f32 %v1662, %v1936
      %v1938 = vpop.f32.mrb[0].mxu0
      %1939 = vmatprep.mubr.f32.mxu0 0.0
      %1940 = vmatmul.mubr.f32.gmra.mrb[0].mxu0 %v1734
      %v1941 = vpop.f32.mrb[0].mxu0
      %v1942 = vadd.f32 %v1662, %v1941
      %v1943 = vpop.f32.mrb[0].mxu0
      %1944 = vmatprep.mubr.f32.mxu0 0.0
      %1945 = vmatmul.mubr.f32.gmra.mrb[0].mxu0 %v1737
      %v1946 = vpop.f32.mrb[0].mxu0
      %v1947 = vadd.f32 %v1662, %v1946
      %v1948 = vpop.f32.mrb[0].mxu0
      %1949 = vmatprep.mubr.f32.mxu0 0.0
      %1950 = vmatmul.mubr.f32.gmra.mrb[0].mxu0 %v1740
      %v1951 = vpop.f32.mrb[0].mxu0
      %v1952 = vadd.f32 %v1662, %v1951
      %v1953 = vpop.f32.mrb[0].mxu0
      %1954 = vmatprep.mubr.f32.mxu0 0.0
      %1955 = vmatmul.mubr.f32.gmra.mrb[0].mxu0 %v1743
      %v1956 = vpop.f32.mrb[0].mxu0
      %v1957 = vadd.f32 %v1662, %v1956
      %v1958 = vpop.f32.mrb[0].mxu0
      %1959 = vmatprep.mubr.f32.mxu0 0.0
      %1960 = vmatmul.mubr.f32.gmra.mrb[0].mxu0 %v1746
      %v1961 = vpop.f32.mrb[0].mxu0
      %v1962 = vadd.f32 %v1662, %v1961
      %v1963 = vpop.f32.mrb[0].mxu0
      %1964 = vmatprep.mubr.f32.mxu0 0.0
      %1965 = vmatmul.mubr.f32.gmra.mrb[0].mxu0 %v1749
      %v1966 = vpop.f32.mrb[0].mxu0
      %v1967 = vadd.f32 %v1662, %v1966
      %v1968 = vpop.f32.mrb[0].mxu0
      %1969 = vmatprep.mubr.f32.mxu0 0.0
      %1970 = vmatmul.mubr.f32.gmra.mrb[0].mxu0 %v1752
      %v1971 = vpop.f32.mrb[0].mxu0
      %v1972 = vadd.f32 %v1662, %v1971
      %v1973 = vpop.f32.mrb[0].mxu0
      %1974 = vmatprep.mubr.f32.mxu0 0.0
      %1975 = vmatmul.mubr.f32.gmra.mrb[0].mxu0 %v1755
      %v1976 = vpop.f32.mrb[0].mxu0
      %v1977 = vadd.f32 %v1662, %v1976
      %v1978 = vpop.f32.mrb[0].mxu0
      %1979 = vmatprep.mubr.f32.mxu0 0.0
      %1980 = vmatmul.mubr.f32.gmra.mrb[0].mxu0 %v1758
      %v1981 = vpop.f32.mrb[0].mxu0
      %v1982 = vadd.f32 %v1662, %v1981
      %v1983 = vpop.f32.mrb[0].mxu0
      %1984 = vdwg.mxu0
      %v1985 = vmax.f32 %v1827, 0.0
      %v1986 = vmax.f32 %v1832, 0.0
      %v1987 = vmax.f32 %v1837, 0.0
      %v1988 = vmax.f32 %v1842, 0.0
      %v1989 = vmax.f32 %v1847, 0.0
      %v1990 = vmax.f32 %v1852, 0.0
      %v1991 = vmax.f32 %v1857, 0.0
      %v1992 = vmax.f32 %v1862, 0.0
      %v1993 = vmax.f32 %v1867, 0.0
      %v1994 = vmax.f32 %v1872, 0.0
      %v1995 = vmax.f32 %v1877, 0.0
      %v1996 = vmax.f32 %v1882, 0.0
      %v1997 = vmax.f32 %v1887, 0.0
      %v1998 = vmax.f32 %v1892, 0.0
      %v1999 = vmax.f32 %v1897, 0.0
      %v2000 = vmax.f32 %v1902, 0.0
      %v2001 = vmax.f32 %v1907, 0.0
      %v2002 = vmax.f32 %v1912, 0.0
      %v2003 = vmax.f32 %v1917, 0.0
      %v2004 = vmax.f32 %v1922, 0.0
      %v2005 = vmax.f32 %v1927, 0.0
      %v2006 = vmax.f32 %v1932, 0.0
      %v2007 = vmax.f32 %v1937, 0.0
      %v2008 = vmax.f32 %v1942, 0.0
      %v2009 = vmax.f32 %v1947, 0.0
      %v2010 = vmax.f32 %v1952, 0.0
      %v2011 = vmax.f32 %v1957, 0.0
      %v2012 = vmax.f32 %v1962, 0.0
      %v2013 = vmax.f32 %v1967, 0.0
      %v2014 = vmax.f32 %v1972, 0.0
      %v2015 = vmax.f32 %v1977, 0.0
      %v2016 = vmax.f32 %v1982, 0.0
      %vm2017 = vcmask 130048
      %2018 = vst.msk [vmem:[%s384] sm:$0xff] %vm2017, %v1985
      %2019 = vst.msk [vmem:[%s384 + $0x8] sm:$0xff] %vm2017, %v1986
      %2020 = vst.msk [vmem:[%s384 + $0x10] sm:$0xff] %vm2017, %v1987
      %2021 = vst.msk [vmem:[%s384 + $0x18] sm:$0xff] %vm2017, %v1988
      %2022 = vst.msk [vmem:[%s384 + $0x20] sm:$0xff] %vm2017, %v1989
      %2023 = vst.msk [vmem:[%s384 + $0x28] sm:$0xff] %vm2017, %v1990
      %2024 = vst.msk [vmem:[%s384 + $0x30] sm:$0xff] %vm2017, %v1991
      %2025 = vst.msk [vmem:[%s384 + $0x38] sm:$0xff] %vm2017, %v1992
      %2026 = vst.msk [vmem:[%s384 + $0x40] sm:$0xff] %vm2017, %v1993
      %2027 = vst.msk [vmem:[%s384 + $0x48] sm:$0xff] %vm2017, %v1994
      %2028 = vst.msk [vmem:[%s384 + $0x50] sm:$0xff] %vm2017, %v1995
      %2029 = vst.msk [vmem:[%s384 + $0x58] sm:$0xff] %vm2017, %v1996
      %2030 = vst.msk [vmem:[%s384 + $0x60] sm:$0xff] %vm2017, %v1997
      %2031 = vst.msk [vmem:[%s384 + $0x68] sm:$0xff] %vm2017, %v1998
      %2032 = vst.msk [vmem:[%s384 + $0x70] sm:$0xff] %vm2017, %v1999
      %2033 = vst.msk [vmem:[%s384 + $0x78] sm:$0xff] %vm2017, %v2000
      %2034 = vst.msk [vmem:[%s384 + $0x80] sm:$0xff] %vm2017, %v2001
      %2035 = vst.msk [vmem:[%s384 + $0x88] sm:$0xff] %vm2017, %v2002
      %2036 = vst.msk [vmem:[%s384 + $0x90] sm:$0xff] %vm2017, %v2003
      %2037 = vst.msk [vmem:[%s384 + $0x98] sm:$0xff] %vm2017, %v2004
      %2038 = vst.msk [vmem:[%s384 + $0xa0] sm:$0xff] %vm2017, %v2005
      %2039 = vst.msk [vmem:[%s384 + $0xa8] sm:$0xff] %vm2017, %v2006
      %2040 = vst.msk [vmem:[%s384 + $0xb0] sm:$0xff] %vm2017, %v2007
      %2041 = vst.msk [vmem:[%s384 + $0xb8] sm:$0xff] %vm2017, %v2008
      %2042 = vst.msk [vmem:[%s384 + $0xc0] sm:$0xff] %vm2017, %v2009
      %2043 = vst.msk [vmem:[%s384 + $0xc8] sm:$0xff] %vm2017, %v2010
      %2044 = vst.msk [vmem:[%s384 + $0xd0] sm:$0xff] %vm2017, %v2011
      %2045 = vst.msk [vmem:[%s384 + $0xd8] sm:$0xff] %vm2017, %v2012
      %2046 = vst.msk [vmem:[%s384 + $0xe0] sm:$0xff] %vm2017, %v2013
      %2047 = vst.msk [vmem:[%s384 + $0xe8] sm:$0xff] %vm2017, %v2014
      %2048 = vst.msk [vmem:[%s384 + $0xf0] sm:$0xff] %vm2017, %v2015
      %2049 = vst.msk [vmem:[%s384 + $0xf8] sm:$0xff] %vm2017, %v2016
      %s2050 = smul.u32 32, %s25
      %p2051 = scmp.lt.s32.totalorder %s24, 1
      %s2052 = scalar_select %p2051, %s24, 1
      %p2053 = scmp.lt.s32.totalorder %s2050, 31
      %s2054 = scalar_select %p2053, %s2050, 31
      %s2055 = smul.addr %s2052, 32
      %s2056 = sadd.s32 %s2054, %s2055
      %s2057 = smul.addr %s2056, 8
      %s2058 = scalar_lea.vmem %s9, %s2057
      // Predicated region
      $region57: #{tpu_custom_call.1} parent=55 // pred_check
        %p2059 = pneg %p253
      $region58: #{tpu_custom_call.1} parent=55 // pred_check_branch
        %2061 = sbr.rel (%p2059) target = $region60
      $region59: #{tpu_custom_call.1} parent=55 // pred_region
        %s2062 = smul.u32 32, %s25
      $region60: #{tpu_custom_call.1} parent=55 // pred_fallthru
        _
    $region56: #{tpu_custom_call.1} parent=5 // pred_fallthru
      _
    %p2063 = scmp.le.s32.totalorder 2, %s15
    // Predicated region
    $region61: #{tpu_custom_call.1} parent=5 // pred_check
      %p2064 = pneg %p2063
    $region62: #{tpu_custom_call.1} parent=5 // pred_check_branch
      %2066 = sbr.rel (%p2064) target = $region64
    $region63: #{tpu_custom_call.1} parent=5 // pred_region
      %s2067 = ssub.s32 %s15, 2
      // Predicated region
      $region65: #{tpu_custom_call.1} parent=63 // pred_check
        %p2068 = pneg %p259
      $region66: #{tpu_custom_call.1} parent=63 // pred_check_branch
        %2070 = sbr.rel (%p2068) target = $region68
      $region67: #{tpu_custom_call.1} parent=63 // pred_region
        %s2071 = smul.u32 32, %s27
        %p2072 = scmp.lt.s32.totalorder %s26, 1
        %s2073 = scalar_select %p2072, %s26, 1
        %p2074 = scmp.lt.s32.totalorder %s2071, 31
        %s2075 = scalar_select %p2074, %s2071, 31
        %s2076 = smul.addr %s2073, 32
        %s2077 = sadd.s32 %s2075, %s2076
        %s2078 = smul.addr %s2077, 8
        %s2079 = scalar_lea.vmem %s9, %s2078
      $region68: #{tpu_custom_call.1} parent=63 // pred_fallthru
        _
    $region64: #{tpu_custom_call.1} parent=5 // pred_fallthru
      _
  $region6: #{tpu_custom_call.1} parent=0 // loop_footer
    %s19 = sadd.s32 1, %s15
  $region7: #{tpu_custom_call.1} parent=0 // loop_footer_branch
    %14 = sbr.rel target = $region3
  $region8: #{tpu_custom_call.1} parent=0 // loop_exit
    _

</llo_original>
